<compile_context>
chip_gen: v7x
topology: tpu7x:2x2x1
jax: 0.10.0
libtpu: 0.0.40
codegen_flags: <defaults>
</compile_context>

<pallas_src>
import math
import functools

import jax
import jax.numpy as jnp
from jax import lax
from jax.experimental import pallas as pl
from jax.experimental.pallas import tpu as pltpu


def _layer_norm(x, gamma, beta, eps):
    mu = jnp.mean(x, axis=-1, keepdims=True)
    var = jnp.mean(jnp.square(x - mu), axis=-1, keepdims=True)
    return (x - mu) * lax.rsqrt(var + eps) * gamma + beta


def _nova_block_kernel(x_ref, side_ref,
                       wqk_ref, wv_ref, wo_ref, bo_ref,
                       gm_ref, bm_ref,
                       w1_ref, b1_ref, w2_ref, b2_ref,
                       gf_ref, bf_ref,
                       o_ref,
                       attn_scratch,
                       *, num_heads, num_sides):
    x = x_ref[0].astype(jnp.float32)                    # (S, H)
    S, H = x.shape
    dh = H // num_heads

    # ---- hoist small params (read each ref exactly once) ----
    bo = bo_ref[...]
    gm = gm_ref[...]; bm = bm_ref[...]
    b1 = b1_ref[...]; b2 = b2_ref[...]
    gf = gf_ref[...]; bf = bf_ref[...]

    # ---- mean fusion of id + side features (pre_ln=False -> LNs are identity) ----
    side = side_ref[0].astype(jnp.float32)              # (S, ns, H)
    fused = (x + jnp.sum(side, axis=1)) * (1.0 / (num_sides + 1))

    # ---- projections: fused Q|K in one wide MXU pass, V from id ----
    qk = jnp.dot(fused.astype(jnp.bfloat16), wqk_ref[...],
                 preferred_element_type=jnp.float32)    # (S, 2H)
    v = jnp.dot(x.astype(jnp.bfloat16), wv_ref[...],
                preferred_element_type=jnp.float32)     # (S, H)

    # Fold the 1/sqrt(dim_H) score scale into Q (Nova scales by sqrt(dim_H), not dh).
    q = qk[:, :H] * (1.0 / math.sqrt(H))
    k = qk[:, H:]

    qb = q.astype(jnp.bfloat16)
    kb = k.astype(jnp.bfloat16)
    vb = v.astype(jnp.bfloat16)

    # ---- per-head attention, results written straight into VMEM scratch ----
    # TODO(synk): attention mask (masked_fill) path not wired; module default mask=None.
    for h in range(num_heads):                          # small static head count
        sl = slice(h * dh, (h + 1) * dh)
        s = lax.dot_general(qb[:, sl], kb[:, sl],
                            (((1,), (1,)), ((), ())),
                            preferred_element_type=jnp.float32)      # (S, S)
        s = s - jnp.max(s, axis=-1, keepdims=True)
        p = jnp.exp(s)
        inv = pl.reciprocal(jnp.sum(p, axis=-1, keepdims=True), approx=True)
        p = p * inv
        attn_scratch[:, sl] = jnp.dot(p.astype(jnp.bfloat16), vb[:, sl],
                                      preferred_element_type=jnp.float32)

    attn = attn_scratch[...]                            # (S, H) f32

    # ---- output projection + residual, then ln_mha ----
    o_proj = jnp.dot(attn.astype(jnp.bfloat16), wo_ref[...],
                     preferred_element_type=jnp.float32) + bo
    y = _layer_norm(x + o_proj, gm, bm, 1e-5)

    # ---- FF (pre_ln=False -> inner ln is Identity), erf-GELU ----
    h1 = jnp.dot(y.astype(jnp.bfloat16), w1_ref[...],
                 preferred_element_type=jnp.float32) + b1
    g = h1 * 0.5 * (1.0 + lax.erf(h1 * (1.0 / math.sqrt(2.0))))
    h2 = jnp.dot(g.astype(jnp.bfloat16), w2_ref[...],
                 preferred_element_type=jnp.float32) + b2
    ff_out = h2 + y

    # ---- final LayerNorm (ln_ff) ----
    out = _layer_norm(ff_out, gf, bf, 1e-5)
    o_ref[0] = out.astype(o_ref.dtype)


def _vmem_limit_bytes(S, H, num_sides):
    w_bytes = 6 * H * H * 2                       # bf16 weights (Wqk counts as 2xHxH)
    vec_bytes = 8 * H * 4                         # biases + LN params (f32)
    act_bytes = S * H * (2 + num_sides) * 4       # id block, side block, out block (f32)
    scratch = S * H * 4
    need = 2 * (w_bytes + vec_bytes + act_bytes) + scratch   # double-buffered pipeline
    return int(min(96 * 1024 * 1024, max(4 * need, 16 * 1024 * 1024)))


def nova_block(x, side, params, num_heads):
    """x: (B, S, H) f32 id embeddings; side: (B, S, num_sides, H) f32 side features."""
    (wq, wk, wv, wo, bo, gm, bm, w1, b1, w2, b2, gf, bf) = params
    B, S, H = x.shape
    NS = side.shape[2]
    assert H % num_heads == 0

    # Fuse Q|K weights into one (H, 2H) matrix; store matmul weights in bf16.
    wqk = jnp.concatenate([wq, wk], axis=1).astype(jnp.bfloat16)
    wv_b = wv.astype(jnp.bfloat16)
    wo_b = wo.astype(jnp.bfloat16)
    w1_b = w1.astype(jnp.bfloat16)
    w2_b = w2.astype(jnp.bfloat16)

    def vec_spec():
        return pl.BlockSpec((1, H), lambda b: (0, 0))

    in_specs = [
        pl.BlockSpec((1, S, H), lambda b: (b, 0, 0)),        # id
        pl.BlockSpec((1, S, NS, H), lambda b: (b, 0, 0, 0)), # side
        pl.BlockSpec((H, 2 * H), lambda b: (0, 0)),          # Wq|Wk (bf16)
        pl.BlockSpec((H, H), lambda b: (0, 0)),              # Wv    (bf16)
        pl.BlockSpec((H, H), lambda b: (0, 0)),              # Wo    (bf16)
        vec_spec(),                                          # bo
        vec_spec(), vec_spec(),                              # ln_mha gamma/beta
        pl.BlockSpec((H, H), lambda b: (0, 0)), vec_spec(),  # fc1 W(bf16), b
        pl.BlockSpec((H, H), lambda b: (0, 0)), vec_spec(),  # fc2 W(bf16), b
        vec_spec(), vec_spec(),                              # ln_ff gamma/beta
    ]

    kernel = functools.partial(_nova_block_kernel,
                               num_heads=num_heads, num_sides=NS)
    return pl.pallas_call(
        kernel,
        out_shape=jax.ShapeDtypeStruct((B, S, H), x.dtype),
        grid=(B,),
        in_specs=in_specs,
        out_specs=pl.BlockSpec((1, S, H), lambda b: (b, 0, 0)),
        scratch_shapes=[pltpu.VMEM((S, H), jnp.float32)],
        compiler_params=pltpu.CompilerParams(
            dimension_semantics=("parallel",),
            vmem_limit_bytes=_vmem_limit_bytes(S, H, NS)),
    )(x, side, wqk, wv_b, wo_b, bo, gm, bm, w1_b, b1, w2_b, b2, gf, bf)


def reference(x, side, params, num_heads):
    """Pure-JAX (f32) reference mirroring the PyTorch Nova_Block forward
    (pre_ln=False, mean fusion, dropout=0, mask=None)."""
    (wq, wk, wv, wo, bo, gm, bm, w1, b1, w2, b2, gf, bf) = params
    B, S, H = x.shape
    ns = side.shape[2]
    dh = H // num_heads

    def ln(z, g, bb, eps=1e-5):
        mu = z.mean(-1, keepdims=True)
        var = ((z - mu) ** 2).mean(-1, keepdims=True)
        return (z - mu) / jnp.sqrt(var + eps) * g + bb

    fused = (x + side.sum(2)) / (ns + 1)
    q, k, v = fused @ wq, fused @ wk, x @ wv
    qh = q.reshape(B, S, num_heads, dh).transpose(0, 2, 1, 3)
    kh = k.reshape(B, S, num_heads, dh).transpose(0, 2, 1, 3)
    vh = v.reshape(B, S, num_heads, dh).transpose(0, 2, 1, 3)
    a = jax.nn.softmax(jnp.einsum('bhqd,bhkd->bhqk', qh, kh) / math.sqrt(H), -1)
    o = jnp.einsum('bhqk,bhkd->bhqd', a, vh).transpose(0, 2, 1, 3).reshape(B, S, H)
    mha_out = x + (o @ wo + bo[0])
    y = ln(mha_out, gm[0], bm[0])
    h1 = y @ w1 + b1[0]
    g = h1 * 0.5 * (1.0 + lax.erf(h1 / math.sqrt(2.0)))
    ff = (g @ w2 + b2[0]) + y
    return ln(ff, gf[0], bf[0])


def make_params(key, H):
    """Deterministic synthetic parameters. Weight matrices stored as (in, out),
    i.e. already transposed relative to torch.nn.Linear.weight."""
    ks = jax.random.split(key, 18)
    s = 1.0 / math.sqrt(H)
    wq = jax.random.uniform(ks[0], (H, H), jnp.float32, -s, s)
    wk = jax.random.uniform(ks[1], (H, H), jnp.float32, -s, s)
    wv = jax.random.uniform(ks[2], (H, H), jnp.float32, -s, s)
    wo = jax.random.uniform(ks[3], (H, H), jnp.float32, -s, s)
    bo = jax.random.uniform(ks[4], (1, H), jnp.float32, -s, s)
    w1 = jax.random.uniform(ks[5], (H, H), jnp.float32, -s, s)
    b1 = jax.random.uniform(ks[6], (1, H), jnp.float32, -s, s)
    w2 = jax.random.uniform(ks[7], (H, H), jnp.float32, -s, s)
    b2 = jax.random.uniform(ks[8], (1, H), jnp.float32, -s, s)
    # LayerNorm affine params (perturbed from identity so LN math is exercised).
    gm = 1.0 + 0.1 * jax.random.normal(ks[9], (1, H), jnp.float32)
    bm = 0.1 * jax.random.normal(ks[10], (1, H), jnp.float32)
    gf = 1.0 + 0.1 * jax.random.normal(ks[11], (1, H), jnp.float32)
    bf = 0.1 * jax.random.normal(ks[12], (1, H), jnp.float32)
    return (wq, wk, wv, wo, bo, gm, bm, w1, b1, w2, b2, gf, bf)


if __name__ == "__main__":
    B, S, H, NUM_HEADS, NUM_SIDES = 2, 8, 32, 4, 1

    key = jax.random.PRNGKey(0)
    kx, ks, kp = jax.random.split(key, 3)
    x = jax.random.normal(kx, (B, S, H), jnp.float32)
    side = jax.random.normal(ks, (B, S, NUM_SIDES, H), jnp.float32)
    params = make_params(kp, H)

    out = nova_block(x, side, params, NUM_HEADS)
    out = jax.block_until_ready(out)

    ref = jax.block_until_ready(reference(x, side, params, NUM_HEADS))
    assert out.shape == (B, S, H)
    # bf16 MXU operands (f32 accumulation) + approx reciprocal -> loosened tolerance.
    assert jnp.allclose(out, ref, atol=5e-2, rtol=5e-2), float(jnp.max(jnp.abs(out - ref)))

    print("KERNEL_OK")
</pallas_src>

<mosaic_0001>
module attributes {stable_mosaic.version = 11 : i64} {
  func.func @_nova_block_kernel(%arg0: i32, %arg1: memref<1x8x32xf32, #tpu.memory_space<vmem>>, %arg2: memref<1x8x1x32xf32, #tpu.memory_space<vmem>>, %arg3: memref<32x64xbf16, #tpu.memory_space<vmem>>, %arg4: memref<32x32xbf16, #tpu.memory_space<vmem>>, %arg5: memref<32x32xbf16, #tpu.memory_space<vmem>>, %arg6: memref<1x32xf32, #tpu.memory_space<vmem>>, %arg7: memref<1x32xf32, #tpu.memory_space<vmem>>, %arg8: memref<1x32xf32, #tpu.memory_space<vmem>>, %arg9: memref<32x32xbf16, #tpu.memory_space<vmem>>, %arg10: memref<1x32xf32, #tpu.memory_space<vmem>>, %arg11: memref<32x32xbf16, #tpu.memory_space<vmem>>, %arg12: memref<1x32xf32, #tpu.memory_space<vmem>>, %arg13: memref<1x32xf32, #tpu.memory_space<vmem>>, %arg14: memref<1x32xf32, #tpu.memory_space<vmem>>, %arg15: memref<1x8x32xf32, #tpu.memory_space<vmem>>, %arg16: memref<8x32xf32, #tpu.memory_space<vmem>>) attributes {dimension_semantics = [#tpu.dimension_semantics<parallel>], iteration_bounds = array<i64: 2>, scalar_prefetch = 0 : i64, scratch_operands = 1 : i64, tpu.core_type = #tpu.core_type<tc>, window_params = [{transform_indices = @transform_0, window_bounds = array<i64: 1, 8, 32>}, {transform_indices = @transform_1, window_bounds = array<i64: 1, 8, 1, 32>}, {pipeline_mode = #tpu.pipeline_mode<synchronous>, transform_indices = @transform_2, window_bounds = array<i64: 32, 64>}, {pipeline_mode = #tpu.pipeline_mode<synchronous>, transform_indices = @transform_3, window_bounds = array<i64: 32, 32>}, {pipeline_mode = #tpu.pipeline_mode<synchronous>, transform_indices = @transform_4, window_bounds = array<i64: 32, 32>}, {pipeline_mode = #tpu.pipeline_mode<synchronous>, transform_indices = @transform_5, window_bounds = array<i64: 1, 32>}, {pipeline_mode = #tpu.pipeline_mode<synchronous>, transform_indices = @transform_6, window_bounds = array<i64: 1, 32>}, {pipeline_mode = #tpu.pipeline_mode<synchronous>, transform_indices = @transform_7, window_bounds = array<i64: 1, 32>}, {pipeline_mode = #tpu.pipeline_mode<synchronous>, transform_indices = @transform_8, window_bounds = array<i64: 32, 32>}, {pipeline_mode = #tpu.pipeline_mode<synchronous>, transform_indices = @transform_9, window_bounds = array<i64: 1, 32>}, {pipeline_mode = #tpu.pipeline_mode<synchronous>, transform_indices = @transform_10, window_bounds = array<i64: 32, 32>}, {pipeline_mode = #tpu.pipeline_mode<synchronous>, transform_indices = @transform_11, window_bounds = array<i64: 1, 32>}, {pipeline_mode = #tpu.pipeline_mode<synchronous>, transform_indices = @transform_12, window_bounds = array<i64: 1, 32>}, {pipeline_mode = #tpu.pipeline_mode<synchronous>, transform_indices = @transform_13, window_bounds = array<i64: 1, 32>}, {transform_indices = @transform_14, window_bounds = array<i64: 1, 8, 32>}]} {
    %c0 = arith.constant 0 : index
    %c0_0 = arith.constant 0 : index
    %c0_1 = arith.constant 0 : index
    %0 = vector.load %arg1[%c0, %c0_0, %c0_1] : memref<1x8x32xf32, #tpu.memory_space<vmem>>, vector<1x8x32xf32>
    %1 = vector.shape_cast %0 : vector<1x8x32xf32> to vector<8x32xf32>
    %c0_2 = arith.constant 0 : index
    %c0_3 = arith.constant 0 : index
    %2 = vector.load %arg6[%c0_2, %c0_3] : memref<1x32xf32, #tpu.memory_space<vmem>>, vector<1x32xf32>
    %c0_4 = arith.constant 0 : index
    %c0_5 = arith.constant 0 : index
    %3 = vector.load %arg7[%c0_4, %c0_5] : memref<1x32xf32, #tpu.memory_space<vmem>>, vector<1x32xf32>
    %c0_6 = arith.constant 0 : index
    %c0_7 = arith.constant 0 : index
    %4 = vector.load %arg8[%c0_6, %c0_7] : memref<1x32xf32, #tpu.memory_space<vmem>>, vector<1x32xf32>
    %c0_8 = arith.constant 0 : index
    %c0_9 = arith.constant 0 : index
    %5 = vector.load %arg10[%c0_8, %c0_9] : memref<1x32xf32, #tpu.memory_space<vmem>>, vector<1x32xf32>
    %c0_10 = arith.constant 0 : index
    %c0_11 = arith.constant 0 : index
    %6 = vector.load %arg12[%c0_10, %c0_11] : memref<1x32xf32, #tpu.memory_space<vmem>>, vector<1x32xf32>
    %c0_12 = arith.constant 0 : index
    %c0_13 = arith.constant 0 : index
    %7 = vector.load %arg13[%c0_12, %c0_13] : memref<1x32xf32, #tpu.memory_space<vmem>>, vector<1x32xf32>
    %c0_14 = arith.constant 0 : index
    %c0_15 = arith.constant 0 : index
    %8 = vector.load %arg14[%c0_14, %c0_15] : memref<1x32xf32, #tpu.memory_space<vmem>>, vector<1x32xf32>
    %c0_16 = arith.constant 0 : index
    %c0_17 = arith.constant 0 : index
    %c0_18 = arith.constant 0 : index
    %c0_19 = arith.constant 0 : index
    %9 = vector.load %arg2[%c0_16, %c0_17, %c0_18, %c0_19] : memref<1x8x1x32xf32, #tpu.memory_space<vmem>>, vector<1x8x1x32xf32>
    %10 = vector.shape_cast %9 : vector<1x8x1x32xf32> to vector<8x1x32xf32>
    %cst = arith.constant dense<0.000000e+00> : vector<8x32xf32>
    %11 = vector.multi_reduction <add>, %10, %cst [1] : vector<8x1x32xf32> to vector<8x32xf32>
    %12 = arith.addf %1, %11 : vector<8x32xf32>
    %cst_20 = arith.constant 5.000000e-01 : f32
    %13 = vector.broadcast %cst_20 : f32 to vector<8x32xf32>
    %14 = arith.mulf %12, %13 : vector<8x32xf32>
    %15 = arith.truncf %14 : vector<8x32xf32> to vector<8x32xbf16>
    %c0_21 = arith.constant 0 : index
    %c0_22 = arith.constant 0 : index
    %16 = vector.load %arg3[%c0_21, %c0_22] : memref<32x64xbf16, #tpu.memory_space<vmem>>, vector<32x64xbf16>
    %cst_23 = arith.constant dense<0.000000e+00> : vector<8x64xf32>
    %17 = tpu.matmul %15, %16, %cst_23 {dimension_numbers = #tpu.dot_dimension_numbers<[1], [0], [0], [1], [0, 0, 1, 1], [], []>} : vector<8x32xbf16>, vector<32x64xbf16>, vector<8x64xf32> -> vector<8x64xf32>
    %18 = arith.truncf %1 : vector<8x32xf32> to vector<8x32xbf16>
    %c0_24 = arith.constant 0 : index
    %c0_25 = arith.constant 0 : index
    %19 = vector.load %arg4[%c0_24, %c0_25] : memref<32x32xbf16, #tpu.memory_space<vmem>>, vector<32x32xbf16>
    %cst_26 = arith.constant dense<0.000000e+00> : vector<8x32xf32>
    %20 = tpu.matmul %18, %19, %cst_26 {dimension_numbers = #tpu.dot_dimension_numbers<[1], [0], [0], [1], [0, 0, 1, 1], [], []>} : vector<8x32xbf16>, vector<32x32xbf16>, vector<8x32xf32> -> vector<8x32xf32>
    %21 = vector.extract_strided_slice %17 {offsets = [0, 0], sizes = [8, 32], strides = [1, 1]} : vector<8x64xf32> to vector<8x32xf32>
    %cst_27 = arith.constant 0.176776692 : f32
    %22 = vector.broadcast %cst_27 : f32 to vector<8x32xf32>
    %23 = arith.mulf %21, %22 : vector<8x32xf32>
    %24 = vector.extract_strided_slice %17 {offsets = [0, 32], sizes = [8, 32], strides = [1, 1]} : vector<8x64xf32> to vector<8x32xf32>
    %25 = arith.truncf %23 : vector<8x32xf32> to vector<8x32xbf16>
    %26 = arith.truncf %24 : vector<8x32xf32> to vector<8x32xbf16>
    %27 = arith.truncf %20 : vector<8x32xf32> to vector<8x32xbf16>
    %28 = vector.extract_strided_slice %25 {offsets = [0, 0], sizes = [8, 8], strides = [1, 1]} : vector<8x32xbf16> to vector<8x8xbf16>
    %29 = vector.extract_strided_slice %26 {offsets = [0, 0], sizes = [8, 8], strides = [1, 1]} : vector<8x32xbf16> to vector<8x8xbf16>
    %cst_28 = arith.constant dense<0.000000e+00> : vector<8x8xf32>
    %30 = tpu.matmul %28, %29, %cst_28 {dimension_numbers = #tpu.dot_dimension_numbers<[1], [1], [0], [0], [0, 0, 1, 0], [], []>} : vector<8x8xbf16>, vector<8x8xbf16>, vector<8x8xf32> -> vector<8x8xf32>
    %cst_29 = arith.constant dense<0xFF800000> : vector<8xf32>
    %31 = vector.multi_reduction <maximumf>, %30, %cst_29 [1] : vector<8x8xf32> to vector<8xf32>
    %32 = vector.shape_cast %31 : vector<8xf32> to vector<8x1xf32>
    %33 = vector.broadcast %32 : vector<8x1xf32> to vector<8x8xf32>
    %34 = arith.subf %30, %33 : vector<8x8xf32>
    %35 = math.exp %34 : vector<8x8xf32>
    %cst_30 = arith.constant dense<0.000000e+00> : vector<8xf32>
    %36 = vector.multi_reduction <add>, %35, %cst_30 [1] : vector<8x8xf32> to vector<8xf32>
    %37 = vector.shape_cast %36 : vector<8xf32> to vector<8x1xf32>
    %38 = tpu.reciprocal %37 {approx = true} : vector<8x1xf32> -> vector<8x1xf32>
    %39 = vector.broadcast %38 : vector<8x1xf32> to vector<8x8xf32>
    %40 = arith.mulf %35, %39 : vector<8x8xf32>
    %41 = arith.truncf %40 : vector<8x8xf32> to vector<8x8xbf16>
    %42 = vector.extract_strided_slice %27 {offsets = [0, 0], sizes = [8, 8], strides = [1, 1]} : vector<8x32xbf16> to vector<8x8xbf16>
    %cst_31 = arith.constant dense<0.000000e+00> : vector<8x8xf32>
    %43 = tpu.matmul %41, %42, %cst_31 {dimension_numbers = #tpu.dot_dimension_numbers<[1], [0], [0], [1], [0, 0, 1, 1], [], []>} : vector<8x8xbf16>, vector<8x8xbf16>, vector<8x8xf32> -> vector<8x8xf32>
    %c0_32 = arith.constant 0 : index
    %c0_33 = arith.constant 0 : index
    %44 = vector.load %arg16[%c0_32, %c0_33] : memref<8x32xf32, #tpu.memory_space<vmem>>, vector<8x8xf32>
    tpu.vector_store %arg16[%c0_32, %c0_33], %43 {strides = array<i32>} : memref<8x32xf32, #tpu.memory_space<vmem>>, vector<8x8xf32>,
    %45 = vector.extract_strided_slice %25 {offsets = [0, 8], sizes = [8, 8], strides = [1, 1]} : vector<8x32xbf16> to vector<8x8xbf16>
    %46 = vector.extract_strided_slice %26 {offsets = [0, 8], sizes = [8, 8], strides = [1, 1]} : vector<8x32xbf16> to vector<8x8xbf16>
    %cst_34 = arith.constant dense<0.000000e+00> : vector<8x8xf32>
    %47 = tpu.matmul %45, %46, %cst_34 {dimension_numbers = #tpu.dot_dimension_numbers<[1], [1], [0], [0], [0, 0, 1, 0], [], []>} : vector<8x8xbf16>, vector<8x8xbf16>, vector<8x8xf32> -> vector<8x8xf32>
    %cst_35 = arith.constant dense<0xFF800000> : vector<8xf32>
    %48 = vector.multi_reduction <maximumf>, %47, %cst_35 [1] : vector<8x8xf32> to vector<8xf32>
    %49 = vector.shape_cast %48 : vector<8xf32> to vector<8x1xf32>
    %50 = vector.broadcast %49 : vector<8x1xf32> to vector<8x8xf32>
    %51 = arith.subf %47, %50 : vector<8x8xf32>
    %52 = math.exp %51 : vector<8x8xf32>
    %cst_36 = arith.constant dense<0.000000e+00> : vector<8xf32>
    %53 = vector.multi_reduction <add>, %52, %cst_36 [1] : vector<8x8xf32> to vector<8xf32>
    %54 = vector.shape_cast %53 : vector<8xf32> to vector<8x1xf32>
    %55 = tpu.reciprocal %54 {approx = true} : vector<8x1xf32> -> vector<8x1xf32>
    %56 = vector.broadcast %55 : vector<8x1xf32> to vector<8x8xf32>
    %57 = arith.mulf %52, %56 : vector<8x8xf32>
    %58 = arith.truncf %57 : vector<8x8xf32> to vector<8x8xbf16>
    %59 = vector.extract_strided_slice %27 {offsets = [0, 8], sizes = [8, 8], strides = [1, 1]} : vector<8x32xbf16> to vector<8x8xbf16>
    %cst_37 = arith.constant dense<0.000000e+00> : vector<8x8xf32>
    %60 = tpu.matmul %58, %59, %cst_37 {dimension_numbers = #tpu.dot_dimension_numbers<[1], [0], [0], [1], [0, 0, 1, 1], [], []>} : vector<8x8xbf16>, vector<8x8xbf16>, vector<8x8xf32> -> vector<8x8xf32>
    %c0_38 = arith.constant 0 : index
    %c8 = arith.constant 8 : index
    %61 = vector.load %arg16[%c0_38, %c8] : memref<8x32xf32, #tpu.memory_space<vmem>>, vector<8x8xf32>
    tpu.vector_store %arg16[%c0_38, %c8], %60 {strides = array<i32>} : memref<8x32xf32, #tpu.memory_space<vmem>>, vector<8x8xf32>,
    %62 = vector.extract_strided_slice %25 {offsets = [0, 16], sizes = [8, 8], strides = [1, 1]} : vector<8x32xbf16> to vector<8x8xbf16>
    %63 = vector.extract_strided_slice %26 {offsets = [0, 16], sizes = [8, 8], strides = [1, 1]} : vector<8x32xbf16> to vector<8x8xbf16>
    %cst_39 = arith.constant dense<0.000000e+00> : vector<8x8xf32>
    %64 = tpu.matmul %62, %63, %cst_39 {dimension_numbers = #tpu.dot_dimension_numbers<[1], [1], [0], [0], [0, 0, 1, 0], [], []>} : vector<8x8xbf16>, vector<8x8xbf16>, vector<8x8xf32> -> vector<8x8xf32>
    %cst_40 = arith.constant dense<0xFF800000> : vector<8xf32>
    %65 = vector.multi_reduction <maximumf>, %64, %cst_40 [1] : vector<8x8xf32> to vector<8xf32>
    %66 = vector.shape_cast %65 : vector<8xf32> to vector<8x1xf32>
    %67 = vector.broadcast %66 : vector<8x1xf32> to vector<8x8xf32>
    %68 = arith.subf %64, %67 : vector<8x8xf32>
    %69 = math.exp %68 : vector<8x8xf32>
    %cst_41 = arith.constant dense<0.000000e+00> : vector<8xf32>
    %70 = vector.multi_reduction <add>, %69, %cst_41 [1] : vector<8x8xf32> to vector<8xf32>
    %71 = vector.shape_cast %70 : vector<8xf32> to vector<8x1xf32>
    %72 = tpu.reciprocal %71 {approx = true} : vector<8x1xf32> -> vector<8x1xf32>
    %73 = vector.broadcast %72 : vector<8x1xf32> to vector<8x8xf32>
    %74 = arith.mulf %69, %73 : vector<8x8xf32>
    %75 = arith.truncf %74 : vector<8x8xf32> to vector<8x8xbf16>
    %76 = vector.extract_strided_slice %27 {offsets = [0, 16], sizes = [8, 8], strides = [1, 1]} : vector<8x32xbf16> to vector<8x8xbf16>
    %cst_42 = arith.constant dense<0.000000e+00> : vector<8x8xf32>
    %77 = tpu.matmul %75, %76, %cst_42 {dimension_numbers = #tpu.dot_dimension_numbers<[1], [0], [0], [1], [0, 0, 1, 1], [], []>} : vector<8x8xbf16>, vector<8x8xbf16>, vector<8x8xf32> -> vector<8x8xf32>
    %c0_43 = arith.constant 0 : index
    %c16 = arith.constant 16 : index
    %78 = vector.load %arg16[%c0_43, %c16] : memref<8x32xf32, #tpu.memory_space<vmem>>, vector<8x8xf32>
    tpu.vector_store %arg16[%c0_43, %c16], %77 {strides = array<i32>} : memref<8x32xf32, #tpu.memory_space<vmem>>, vector<8x8xf32>,
    %79 = vector.extract_strided_slice %25 {offsets = [0, 24], sizes = [8, 8], strides = [1, 1]} : vector<8x32xbf16> to vector<8x8xbf16>
    %80 = vector.extract_strided_slice %26 {offsets = [0, 24], sizes = [8, 8], strides = [1, 1]} : vector<8x32xbf16> to vector<8x8xbf16>
    %cst_44 = arith.constant dense<0.000000e+00> : vector<8x8xf32>
    %81 = tpu.matmul %79, %80, %cst_44 {dimension_numbers = #tpu.dot_dimension_numbers<[1], [1], [0], [0], [0, 0, 1, 0], [], []>} : vector<8x8xbf16>, vector<8x8xbf16>, vector<8x8xf32> -> vector<8x8xf32>
    %cst_45 = arith.constant dense<0xFF800000> : vector<8xf32>
    %82 = vector.multi_reduction <maximumf>, %81, %cst_45 [1] : vector<8x8xf32> to vector<8xf32>
    %83 = vector.shape_cast %82 : vector<8xf32> to vector<8x1xf32>
    %84 = vector.broadcast %83 : vector<8x1xf32> to vector<8x8xf32>
    %85 = arith.subf %81, %84 : vector<8x8xf32>
    %86 = math.exp %85 : vector<8x8xf32>
    %cst_46 = arith.constant dense<0.000000e+00> : vector<8xf32>
    %87 = vector.multi_reduction <add>, %86, %cst_46 [1] : vector<8x8xf32> to vector<8xf32>
    %88 = vector.shape_cast %87 : vector<8xf32> to vector<8x1xf32>
    %89 = tpu.reciprocal %88 {approx = true} : vector<8x1xf32> -> vector<8x1xf32>
    %90 = vector.broadcast %89 : vector<8x1xf32> to vector<8x8xf32>
    %91 = arith.mulf %86, %90 : vector<8x8xf32>
    %92 = arith.truncf %91 : vector<8x8xf32> to vector<8x8xbf16>
    %93 = vector.extract_strided_slice %27 {offsets = [0, 24], sizes = [8, 8], strides = [1, 1]} : vector<8x32xbf16> to vector<8x8xbf16>
    %cst_47 = arith.constant dense<0.000000e+00> : vector<8x8xf32>
    %94 = tpu.matmul %92, %93, %cst_47 {dimension_numbers = #tpu.dot_dimension_numbers<[1], [0], [0], [1], [0, 0, 1, 1], [], []>} : vector<8x8xbf16>, vector<8x8xbf16>, vector<8x8xf32> -> vector<8x8xf32>
    %c0_48 = arith.constant 0 : index
    %c24 = arith.constant 24 : index
    %95 = vector.load %arg16[%c0_48, %c24] : memref<8x32xf32, #tpu.memory_space<vmem>>, vector<8x8xf32>
    tpu.vector_store %arg16[%c0_48, %c24], %94 {strides = array<i32>} : memref<8x32xf32, #tpu.memory_space<vmem>>, vector<8x8xf32>,
    %c0_49 = arith.constant 0 : index
    %c0_50 = arith.constant 0 : index
    %96 = vector.load %arg16[%c0_49, %c0_50] : memref<8x32xf32, #tpu.memory_space<vmem>>, vector<8x32xf32>
    %97 = arith.truncf %96 : vector<8x32xf32> to vector<8x32xbf16>
    %c0_51 = arith.constant 0 : index
    %c0_52 = arith.constant 0 : index
    %98 = vector.load %arg5[%c0_51, %c0_52] : memref<32x32xbf16, #tpu.memory_space<vmem>>, vector<32x32xbf16>
    %cst_53 = arith.constant dense<0.000000e+00> : vector<8x32xf32>
    %99 = tpu.matmul %97, %98, %cst_53 {dimension_numbers = #tpu.dot_dimension_numbers<[1], [0], [0], [1], [0, 0, 1, 1], [], []>} : vector<8x32xbf16>, vector<32x32xbf16>, vector<8x32xf32> -> vector<8x32xf32>
    %100 = vector.broadcast %2 : vector<1x32xf32> to vector<8x32xf32>
    %101 = arith.addf %99, %100 : vector<8x32xf32>
    %102 = arith.addf %1, %101 : vector<8x32xf32>
    %cst_54 = arith.constant dense<0.000000e+00> : vector<8xf32>
    %103 = vector.multi_reduction <add>, %102, %cst_54 [1] : vector<8x32xf32> to vector<8xf32>
    %104 = vector.shape_cast %103 : vector<8xf32> to vector<8x1xf32>
    %cst_55 = arith.constant 3.200000e+01 : f32
    %105 = vector.broadcast %cst_55 : f32 to vector<8x1xf32>
    %106 = arith.divf %104, %105 : vector<8x1xf32>
    %107 = vector.broadcast %106 : vector<8x1xf32> to vector<8x32xf32>
    %108 = arith.subf %102, %107 : vector<8x32xf32>
    %109 = arith.mulf %108, %108 : vector<8x32xf32>
    %cst_56 = arith.constant dense<0.000000e+00> : vector<8xf32>
    %110 = vector.multi_reduction <add>, %109, %cst_56 [1] : vector<8x32xf32> to vector<8xf32>
    %111 = vector.shape_cast %110 : vector<8xf32> to vector<8x1xf32>
    %cst_57 = arith.constant 3.200000e+01 : f32
    %112 = vector.broadcast %cst_57 : f32 to vector<8x1xf32>
    %113 = arith.divf %111, %112 : vector<8x1xf32>
    %114 = vector.broadcast %106 : vector<8x1xf32> to vector<8x32xf32>
    %115 = arith.subf %102, %114 : vector<8x32xf32>
    %cst_58 = arith.constant 9.99999974E-6 : f32
    %116 = vector.broadcast %cst_58 : f32 to vector<8x1xf32>
    %117 = arith.addf %113, %116 : vector<8x1xf32>
    %118 = math.rsqrt %117 : vector<8x1xf32>
    %119 = vector.broadcast %118 : vector<8x1xf32> to vector<8x32xf32>
    %120 = arith.mulf %115, %119 : vector<8x32xf32>
    %121 = vector.broadcast %3 : vector<1x32xf32> to vector<8x32xf32>
    %122 = arith.mulf %120, %121 : vector<8x32xf32>
    %123 = vector.broadcast %4 : vector<1x32xf32> to vector<8x32xf32>
    %124 = arith.addf %122, %123 : vector<8x32xf32>
    %125 = arith.truncf %124 : vector<8x32xf32> to vector<8x32xbf16>
    %c0_59 = arith.constant 0 : index
    %c0_60 = arith.constant 0 : index
    %126 = vector.load %arg9[%c0_59, %c0_60] : memref<32x32xbf16, #tpu.memory_space<vmem>>, vector<32x32xbf16>
    %cst_61 = arith.constant dense<0.000000e+00> : vector<8x32xf32>
    %127 = tpu.matmul %125, %126, %cst_61 {dimension_numbers = #tpu.dot_dimension_numbers<[1], [0], [0], [1], [0, 0, 1, 1], [], []>} : vector<8x32xbf16>, vector<32x32xbf16>, vector<8x32xf32> -> vector<8x32xf32>
    %128 = vector.broadcast %5 : vector<1x32xf32> to vector<8x32xf32>
    %129 = arith.addf %127, %128 : vector<8x32xf32>
    %cst_62 = arith.constant 5.000000e-01 : f32
    %130 = vector.broadcast %cst_62 : f32 to vector<8x32xf32>
    %131 = arith.mulf %129, %130 : vector<8x32xf32>
    %cst_63 = arith.constant 0.707106769 : f32
    %132 = vector.broadcast %cst_63 : f32 to vector<8x32xf32>
    %133 = arith.mulf %129, %132 : vector<8x32xf32>
    %134 = math.erf %133 : vector<8x32xf32>
    %cst_64 = arith.constant 1.000000e+00 : f32
    %135 = vector.broadcast %cst_64 : f32 to vector<8x32xf32>
    %136 = arith.addf %135, %134 : vector<8x32xf32>
    %137 = arith.mulf %131, %136 : vector<8x32xf32>
    %138 = arith.truncf %137 : vector<8x32xf32> to vector<8x32xbf16>
    %c0_65 = arith.constant 0 : index
    %c0_66 = arith.constant 0 : index
    %139 = vector.load %arg11[%c0_65, %c0_66] : memref<32x32xbf16, #tpu.memory_space<vmem>>, vector<32x32xbf16>
    %cst_67 = arith.constant dense<0.000000e+00> : vector<8x32xf32>
    %140 = tpu.matmul %138, %139, %cst_67 {dimension_numbers = #tpu.dot_dimension_numbers<[1], [0], [0], [1], [0, 0, 1, 1], [], []>} : vector<8x32xbf16>, vector<32x32xbf16>, vector<8x32xf32> -> vector<8x32xf32>
    %141 = vector.broadcast %6 : vector<1x32xf32> to vector<8x32xf32>
    %142 = arith.addf %140, %141 : vector<8x32xf32>
    %143 = arith.addf %142, %124 : vector<8x32xf32>
    %cst_68 = arith.constant dense<0.000000e+00> : vector<8xf32>
    %144 = vector.multi_reduction <add>, %143, %cst_68 [1] : vector<8x32xf32> to vector<8xf32>
    %145 = vector.shape_cast %144 : vector<8xf32> to vector<8x1xf32>
    %cst_69 = arith.constant 3.200000e+01 : f32
    %146 = vector.broadcast %cst_69 : f32 to vector<8x1xf32>
    %147 = arith.divf %145, %146 : vector<8x1xf32>
    %148 = vector.broadcast %147 : vector<8x1xf32> to vector<8x32xf32>
    %149 = arith.subf %143, %148 : vector<8x32xf32>
    %150 = arith.mulf %149, %149 : vector<8x32xf32>
    %cst_70 = arith.constant dense<0.000000e+00> : vector<8xf32>
    %151 = vector.multi_reduction <add>, %150, %cst_70 [1] : vector<8x32xf32> to vector<8xf32>
    %152 = vector.shape_cast %151 : vector<8xf32> to vector<8x1xf32>
    %cst_71 = arith.constant 3.200000e+01 : f32
    %153 = vector.broadcast %cst_71 : f32 to vector<8x1xf32>
    %154 = arith.divf %152, %153 : vector<8x1xf32>
    %155 = vector.broadcast %147 : vector<8x1xf32> to vector<8x32xf32>
    %156 = arith.subf %143, %155 : vector<8x32xf32>
    %cst_72 = arith.constant 9.99999974E-6 : f32
    %157 = vector.broadcast %cst_72 : f32 to vector<8x1xf32>
    %158 = arith.addf %154, %157 : vector<8x1xf32>
    %159 = math.rsqrt %158 : vector<8x1xf32>
    %160 = vector.broadcast %159 : vector<8x1xf32> to vector<8x32xf32>
    %161 = arith.mulf %156, %160 : vector<8x32xf32>
    %162 = vector.broadcast %7 : vector<1x32xf32> to vector<8x32xf32>
    %163 = arith.mulf %161, %162 : vector<8x32xf32>
    %164 = vector.broadcast %8 : vector<1x32xf32> to vector<8x32xf32>
    %165 = arith.addf %163, %164 : vector<8x32xf32>
    %c0_73 = arith.constant 0 : index
    %c0_74 = arith.constant 0 : index
    %c0_75 = arith.constant 0 : index
    %166 = vector.load %arg15[%c0_73, %c0_74, %c0_75] : memref<1x8x32xf32, #tpu.memory_space<vmem>>, vector<1x8x32xf32>
    %167 = vector.shape_cast %166 : vector<1x8x32xf32> to vector<8x32xf32>
    %168 = vector.shape_cast %165 : vector<8x32xf32> to vector<1x8x32xf32>
    tpu.vector_store %arg15[%c0_73, %c0_74, %c0_75], %168 {strides = array<i32>} : memref<1x8x32xf32, #tpu.memory_space<vmem>>, vector<1x8x32xf32>,
    return
  }
  func.func @transform_0(%arg0: i32) -> (i32, i32, i32) {
    %c0_i32 = arith.constant 0 : i32
    %c0_i32_0 = arith.constant 0 : i32
    %c0_i32_1 = arith.constant 0 : i32
    return %arg0, %c0_i32, %c0_i32_0 : i32, i32, i32
  }
  func.func @transform_1(%arg0: i32) -> (i32, i32, i32, i32) {
    %c0_i32 = arith.constant 0 : i32
    %c0_i32_0 = arith.constant 0 : i32
    %c0_i32_1 = arith.constant 0 : i32
    %c0_i32_2 = arith.constant 0 : i32
    return %arg0, %c0_i32, %c0_i32_0, %c0_i32_1 : i32, i32, i32, i32
  }
  func.func @transform_2(%arg0: i32) -> (i32, i32) {
    %c0_i32 = arith.constant 0 : i32
    %c0_i32_0 = arith.constant 0 : i32
    %c0_i32_1 = arith.constant 0 : i32
    return %c0_i32, %c0_i32_0 : i32, i32
  }
  func.func @transform_3(%arg0: i32) -> (i32, i32) {
    %c0_i32 = arith.constant 0 : i32
    %c0_i32_0 = arith.constant 0 : i32
    %c0_i32_1 = arith.constant 0 : i32
    return %c0_i32, %c0_i32_0 : i32, i32
  }
  func.func @transform_4(%arg0: i32) -> (i32, i32) {
    %c0_i32 = arith.constant 0 : i32
    %c0_i32_0 = arith.constant 0 : i32
    %c0_i32_1 = arith.constant 0 : i32
    return %c0_i32, %c0_i32_0 : i32, i32
  }
  func.func @transform_5(%arg0: i32) -> (i32, i32) {
    %c0_i32 = arith.constant 0 : i32
    %c0_i32_0 = arith.constant 0 : i32
    %c0_i32_1 = arith.constant 0 : i32
    return %c0_i32, %c0_i32_0 : i32, i32
  }
  func.func @transform_6(%arg0: i32) -> (i32, i32) {
    %c0_i32 = arith.constant 0 : i32
    %c0_i32_0 = arith.constant 0 : i32
    %c0_i32_1 = arith.constant 0 : i32
    return %c0_i32, %c0_i32_0 : i32, i32
  }
  func.func @transform_7(%arg0: i32) -> (i32, i32) {
    %c0_i32 = arith.constant 0 : i32
    %c0_i32_0 = arith.constant 0 : i32
    %c0_i32_1 = arith.constant 0 : i32
    return %c0_i32, %c0_i32_0 : i32, i32
  }
  func.func @transform_8(%arg0: i32) -> (i32, i32) {
    %c0_i32 = arith.constant 0 : i32
    %c0_i32_0 = arith.constant 0 : i32
    %c0_i32_1 = arith.constant 0 : i32
    return %c0_i32, %c0_i32_0 : i32, i32
  }
  func.func @transform_9(%arg0: i32) -> (i32, i32) {
    %c0_i32 = arith.constant 0 : i32
    %c0_i32_0 = arith.constant 0 : i32
    %c0_i32_1 = arith.constant 0 : i32
    return %c0_i32, %c0_i32_0 : i32, i32
  }
  func.func @transform_10(%arg0: i32) -> (i32, i32) {
    %c0_i32 = arith.constant 0 : i32
    %c0_i32_0 = arith.constant 0 : i32
    %c0_i32_1 = arith.constant 0 : i32
    return %c0_i32, %c0_i32_0 : i32, i32
  }
  func.func @transform_11(%arg0: i32) -> (i32, i32) {
    %c0_i32 = arith.constant 0 : i32
    %c0_i32_0 = arith.constant 0 : i32
    %c0_i32_1 = arith.constant 0 : i32
    return %c0_i32, %c0_i32_0 : i32, i32
  }
  func.func @transform_12(%arg0: i32) -> (i32, i32) {
    %c0_i32 = arith.constant 0 : i32
    %c0_i32_0 = arith.constant 0 : i32
    %c0_i32_1 = arith.constant 0 : i32
    return %c0_i32, %c0_i32_0 : i32, i32
  }
  func.func @transform_13(%arg0: i32) -> (i32, i32) {
    %c0_i32 = arith.constant 0 : i32
    %c0_i32_0 = arith.constant 0 : i32
    %c0_i32_1 = arith.constant 0 : i32
    return %c0_i32, %c0_i32_0 : i32, i32
  }
  func.func @transform_14(%arg0: i32) -> (i32, i32, i32) {
    %c0_i32 = arith.constant 0 : i32
    %c0_i32_0 = arith.constant 0 : i32
    %c0_i32_1 = arith.constant 0 : i32
    return %arg0, %c0_i32, %c0_i32_0 : i32, i32, i32
  }
}

</mosaic_0001>

<llo_original>
// kernel: tpu_custom_call.1
$region0: #{tpu_custom_call.1}
  #allocation0 [shape = 'u32[]', space=smem, size = 0x4, offset = 0x4, fixed_abs, tag = 'smem constant byte address 0x4 - core index']
  #allocation1 [shape = 'u32[144,128]{1,0:T(1,128)}', space=vmem, size = 0x12000, scoped, tag = 'internal scratch']
  #allocation2 [shape = 'f32[8,32]{1,0:T(8,128)}', space=vmem, size = 0x1000, scoped, tag = 'scratch operand']
  %s0 = inlined_call_operand.hbm [shape: f32[2,8,32], index: 0, kind: input, shape index: {}]
  %s1 = inlined_call_operand.hbm [shape: f32[2,8,1,32], index: 1, kind: input, shape index: {}]
  %s2 = inlined_call_operand.hbm [shape: bf16[32,64], index: 2, kind: input, shape index: {}]
  %s3 = inlined_call_operand.hbm [shape: bf16[32,32], index: 3, kind: input, shape index: {}]
  %s4 = inlined_call_operand.hbm [shape: bf16[32,32], index: 4, kind: input, shape index: {}]
  %s5 = inlined_call_operand.vmem [shape: f32[1,32], index: 5, kind: input, shape index: {}]
  %s6 = inlined_call_operand.vmem [shape: f32[1,32], index: 6, kind: input, shape index: {}]
  %s7 = inlined_call_operand.hbm [shape: f32[1,32], index: 7, kind: input, shape index: {}]
  %s8 = inlined_call_operand.vmem [shape: bf16[32,32], index: 8, kind: input, shape index: {}]
  %s9 = inlined_call_operand.hbm [shape: f32[1,32], index: 9, kind: input, shape index: {}]
  %s10 = inlined_call_operand.vmem [shape: bf16[32,32], index: 10, kind: input, shape index: {}]
  %s11 = inlined_call_operand.vmem [shape: f32[1,32], index: 11, kind: input, shape index: {}]
  %s12 = inlined_call_operand.vmem [shape: f32[1,32], index: 12, kind: input, shape index: {}]
  %s13 = inlined_call_operand.vmem [shape: f32[1,32], index: 13, kind: input, shape index: {}]
  %s14 = inlined_call_operand.hbm [shape: f32[2,8,32], index: 14, kind: output, shape index: {}]
  %s15 = sld [smem:[#allocation0]]
  $region117: #{tpu_custom_call.1} parent=0
    _
  %s17 = ssub.s32 1, %s15
  %s18 = scalar_select 0, %s17, %s15
  $region1: #{tpu_custom_call.1} parent=0
    #allocation3 [shape = 'u8[8192]{0}', space=vmem, size = 0x2000, scoped, tag = 'input window, operand 0']
    #allocation4 [shape = 's32[2]{0}', space=sflag, size = 0x8, scoped, tag = 'scoped memory for tpu_custom_call.1']
    #allocation5 [shape = 's32[2]{0}', space=sflag, size = 0x8, scoped, tag = 'scoped memory for tpu_custom_call.1']
    #allocation6 [shape = 'u8[8192]{0}', space=vmem, size = 0x2000, scoped, tag = 'input window, operand 1']
    #allocation7 [shape = 's32[2]{0}', space=sflag, size = 0x8, scoped, tag = 'scoped memory for tpu_custom_call.1']
    #allocation8 [shape = 'u8[8192]{0}', space=vmem, size = 0x2000, scoped, tag = 'input window, operand 2, single buffered']
    #allocation9 [shape = 'u8[8192]{0}', space=vmem, size = 0x2000, scoped, tag = 'input window, operand 3, single buffered']
    #allocation10 [shape = 's32[1]{0}', space=sflag, size = 0x4, scoped, tag = 'scoped memory for tpu_custom_call.1']
    #allocation11 [shape = 'u8[8192]{0}', space=vmem, size = 0x2000, scoped, tag = 'input window, operand 4, single buffered']
    #allocation12 [shape = 'u8[512]{0}', space=vmem, size = 0x400, scoped, tag = 'input window, operand 7, single buffered']
    #allocation13 [shape = 's32[1]{0}', space=sflag, size = 0x4, scoped, tag = 'scoped memory for tpu_custom_call.1']
    #allocation14 [shape = 'u8[512]{0}', space=vmem, size = 0x400, scoped, tag = 'input window, operand 9, single buffered']
    #allocation15 [shape = 'u8[8192]{0}', space=vmem, size = 0x2000, scoped, tag = 'output window, operand 0']
    %19 = vsyncpa [#allocation4], 0
    %s20 = scalar_lea.sflag [#allocation4], 1
    %21 = vsyncpa %s20, 0
    %22 = vsyncpa [#allocation7], 0
    %s23 = scalar_lea.sflag [#allocation7], 1
    %24 = vsyncpa %s23, 0
    %25 = vsyncpa [#allocation10], 0
    %26 = vsyncpa [#allocation13], 0
    %27 = vsyncpa [#allocation5], 0
    %s28 = scalar_lea.sflag [#allocation5], 1
    %29 = vsyncpa %s28, 0
    loop: start=0, step=1, limit=4
    $region2: #{tpu_custom_call.1} parent=1 // loop_pre_header
      _
    $region3: #{tpu_custom_call.1} parent=1 // loop_header
      %s31 = sphi 0, %s35
      %p32 = scmp.ge.s32.totalorder %s31, 4
      %s41 = sphi 0, %s43
      %s44 = sphi 0, %s41
      %s45 = sphi 0, %s44
      %s61 = sphi 0, %s45
      %s67 = sphi 0, %s69
      %s70 = sphi 0, %s67
      %s71 = sphi 0, %s70
      %s87 = sphi 0, %s71
      %s91 = sphi 0, %s91
      %s93 = sphi 0, %s91
      %s94 = sphi 0, %s93
      %s108 = sphi 0, %s94
      %s112 = sphi 0, %s112
      %s114 = sphi 0, %s112
      %s115 = sphi 0, %s114
      %s129 = sphi 0, %s115
      %s133 = sphi 0, %s133
      %s135 = sphi 0, %s133
      %s136 = sphi 0, %s135
      %s150 = sphi 0, %s136
      %s154 = sphi 0, %s154
      %s156 = sphi 0, %s154
      %s157 = sphi 0, %s156
      %s171 = sphi 0, %s157
      %s175 = sphi 0, %s175
      %s177 = sphi 0, %s175
      %s178 = sphi 0, %s177
      %s192 = sphi 0, %s178
      %s196 = sphi 0, %s196
      %s198 = sphi 0, %s196
      %s199 = sphi 0, %s198
      %s213 = sphi 0, %s199
      %s217 = sphi 0, %s217
      %s219 = sphi 0, %s217
      %s220 = sphi 0, %s219
      %s234 = sphi 0, %s220
      %s238 = sphi 0, %s238
      %s240 = sphi 0, %s238
      %s241 = sphi 0, %s240
      %s255 = sphi 0, %s241
      %s259 = sphi 0, %s259
      %s261 = sphi 0, %s259
      %s262 = sphi 0, %s261
      %s276 = sphi 0, %s262
      %s280 = sphi 0, %s280
      %s282 = sphi 0, %s280
      %s283 = sphi 0, %s282
      %s297 = sphi 0, %s283
      %s301 = sphi 0, %s301
      %s303 = sphi 0, %s301
      %s304 = sphi 0, %s303
      %s318 = sphi 0, %s304
      %s322 = sphi 0, %s322
      %s324 = sphi 0, %s322
      %s325 = sphi 0, %s324
      %s339 = sphi 0, %s325
      %s345 = sphi 0, %s347
      %s348 = sphi 0, %s345
      %s349 = sphi 0, %s348
      %s365 = sphi 0, %s349
    $region4: #{tpu_custom_call.1} parent=1 // loop_header_branch
      %34 = sbr.rel (%p32) target = $region8
    $region5: #{tpu_custom_call.1} parent=1 // loop_body
      %s36 = ssub.s32 %s31, 1
      %s37 = ssub.s32 %s31, 2
      %s38 = sadd.s32 %s31, 1
      %s39 = ssub.s32 %s31, %s38
      %p40 = scmp.eq.s32.totalorder %s39, 0
      %s42 = sadd.s32 %s41, 1
      %s43 = scalar_select %p40, %s41, %s42
      %p46 = pneg %p40
      %p47 = scmp.eq.s32.totalorder %s31, 1
      %p48 = por %p46, %p47
      %p49 = scmp.ne.s32.totalorder %s41, %s44
      %p50 = scmp.eq.s32.totalorder %s31, 0
      %p51 = por %p49, %p50
      %p52 = scmp.ne.s32.totalorder %s41, %s44
      %p53 = scmp.eq.s32.totalorder %s36, 1
      %p54 = por %p52, %p53
      %p55 = scmp.ne.s32.totalorder %s44, %s45
      %p56 = scmp.eq.s32.totalorder %s36, 0
      %p57 = por %p55, %p56
      %p58 = scmp.ne.s32.totalorder %s44, %s45
      %p59 = scmp.eq.s32.totalorder %s37, 1
      %p60 = por %p58, %p59
      %p62 = scmp.ne.s32.totalorder %s45, %s61
      %p63 = scmp.eq.s32.totalorder %s37, 0
      %p64 = por %p62, %p63
      %s65 = ssub.s32 %s31, %s38
      %p66 = scmp.eq.s32.totalorder %s65, 0
      %s68 = sadd.s32 %s67, 1
      %s69 = scalar_select %p66, %s67, %s68
      %p72 = pneg %p66
      %p73 = scmp.eq.s32.totalorder %s31, 1
      %p74 = por %p72, %p73
      %p75 = scmp.ne.s32.totalorder %s67, %s70
      %p76 = scmp.eq.s32.totalorder %s31, 0
      %p77 = por %p75, %p76
      %p78 = scmp.ne.s32.totalorder %s67, %s70
      %p79 = scmp.eq.s32.totalorder %s36, 1
      %p80 = por %p78, %p79
      %p81 = scmp.ne.s32.totalorder %s70, %s71
      %p82 = scmp.eq.s32.totalorder %s36, 0
      %p83 = por %p81, %p82
      %p84 = scmp.ne.s32.totalorder %s70, %s71
      %p85 = scmp.eq.s32.totalorder %s37, 1
      %p86 = por %p84, %p85
      %p88 = scmp.ne.s32.totalorder %s71, %s87
      %p89 = scmp.eq.s32.totalorder %s37, 0
      %p90 = por %p88, %p89
      %s92 = sadd.s32 %s91, 1
      %p95 = scmp.eq.s32.totalorder %s31, 1
      %p96 = scmp.ne.s32.totalorder %s91, %s93
      %p97 = scmp.eq.s32.totalorder %s31, 0
      %p98 = por %p96, %p97
      %p99 = scmp.ne.s32.totalorder %s91, %s93
      %p100 = scmp.eq.s32.totalorder %s36, 1
      %p101 = por %p99, %p100
      %p102 = scmp.ne.s32.totalorder %s93, %s94
      %p103 = scmp.eq.s32.totalorder %s36, 0
      %p104 = por %p102, %p103
      %p105 = scmp.ne.s32.totalorder %s93, %s94
      %p106 = scmp.eq.s32.totalorder %s37, 1
      %p107 = por %p105, %p106
      %p109 = scmp.ne.s32.totalorder %s94, %s108
      %p110 = scmp.eq.s32.totalorder %s37, 0
      %p111 = por %p109, %p110
      %s113 = sadd.s32 %s112, 1
      %p116 = scmp.eq.s32.totalorder %s31, 1
      %p117 = scmp.ne.s32.totalorder %s112, %s114
      %p118 = scmp.eq.s32.totalorder %s31, 0
      %p119 = por %p117, %p118
      %p120 = scmp.ne.s32.totalorder %s112, %s114
      %p121 = scmp.eq.s32.totalorder %s36, 1
      %p122 = por %p120, %p121
      %p123 = scmp.ne.s32.totalorder %s114, %s115
      %p124 = scmp.eq.s32.totalorder %s36, 0
      %p125 = por %p123, %p124
      %p126 = scmp.ne.s32.totalorder %s114, %s115
      %p127 = scmp.eq.s32.totalorder %s37, 1
      %p128 = por %p126, %p127
      %p130 = scmp.ne.s32.totalorder %s115, %s129
      %p131 = scmp.eq.s32.totalorder %s37, 0
      %p132 = por %p130, %p131
      %s134 = sadd.s32 %s133, 1
      %p137 = scmp.eq.s32.totalorder %s31, 1
      %p138 = scmp.ne.s32.totalorder %s133, %s135
      %p139 = scmp.eq.s32.totalorder %s31, 0
      %p140 = por %p138, %p139
      %p141 = scmp.ne.s32.totalorder %s133, %s135
      %p142 = scmp.eq.s32.totalorder %s36, 1
      %p143 = por %p141, %p142
      %p144 = scmp.ne.s32.totalorder %s135, %s136
      %p145 = scmp.eq.s32.totalorder %s36, 0
      %p146 = por %p144, %p145
      %p147 = scmp.ne.s32.totalorder %s135, %s136
      %p148 = scmp.eq.s32.totalorder %s37, 1
      %p149 = por %p147, %p148
      %p151 = scmp.ne.s32.totalorder %s136, %s150
      %p152 = scmp.eq.s32.totalorder %s37, 0
      %p153 = por %p151, %p152
      %s155 = sadd.s32 %s154, 1
      %p158 = scmp.eq.s32.totalorder %s31, 1
      %p159 = scmp.ne.s32.totalorder %s154, %s156
      %p160 = scmp.eq.s32.totalorder %s31, 0
      %p161 = por %p159, %p160
      %p162 = scmp.ne.s32.totalorder %s154, %s156
      %p163 = scmp.eq.s32.totalorder %s36, 1
      %p164 = por %p162, %p163
      %p165 = scmp.ne.s32.totalorder %s156, %s157
      %p166 = scmp.eq.s32.totalorder %s36, 0
      %p167 = por %p165, %p166
      %p168 = scmp.ne.s32.totalorder %s156, %s157
      %p169 = scmp.eq.s32.totalorder %s37, 1
      %p170 = por %p168, %p169
      %p172 = scmp.ne.s32.totalorder %s157, %s171
      %p173 = scmp.eq.s32.totalorder %s37, 0
      %p174 = por %p172, %p173
      %s176 = sadd.s32 %s175, 1
      %p179 = scmp.eq.s32.totalorder %s31, 1
      %p180 = scmp.ne.s32.totalorder %s175, %s177
      %p181 = scmp.eq.s32.totalorder %s31, 0
      %p182 = por %p180, %p181
      %p183 = scmp.ne.s32.totalorder %s175, %s177
      %p184 = scmp.eq.s32.totalorder %s36, 1
      %p185 = por %p183, %p184
      %p186 = scmp.ne.s32.totalorder %s177, %s178
      %p187 = scmp.eq.s32.totalorder %s36, 0
      %p188 = por %p186, %p187
      %p189 = scmp.ne.s32.totalorder %s177, %s178
      %p190 = scmp.eq.s32.totalorder %s37, 1
      %p191 = por %p189, %p190
      %p193 = scmp.ne.s32.totalorder %s178, %s192
      %p194 = scmp.eq.s32.totalorder %s37, 0
      %p195 = por %p193, %p194
      %s197 = sadd.s32 %s196, 1
      %p200 = scmp.eq.s32.totalorder %s31, 1
      %p201 = scmp.ne.s32.totalorder %s196, %s198
      %p202 = scmp.eq.s32.totalorder %s31, 0
      %p203 = por %p201, %p202
      %p204 = scmp.ne.s32.totalorder %s196, %s198
      %p205 = scmp.eq.s32.totalorder %s36, 1
      %p206 = por %p204, %p205
      %p207 = scmp.ne.s32.totalorder %s198, %s199
      %p208 = scmp.eq.s32.totalorder %s36, 0
      %p209 = por %p207, %p208
      %p210 = scmp.ne.s32.totalorder %s198, %s199
      %p211 = scmp.eq.s32.totalorder %s37, 1
      %p212 = por %p210, %p211
      %p214 = scmp.ne.s32.totalorder %s199, %s213
      %p215 = scmp.eq.s32.totalorder %s37, 0
      %p216 = por %p214, %p215
      %s218 = sadd.s32 %s217, 1
      %p221 = scmp.eq.s32.totalorder %s31, 1
      %p222 = scmp.ne.s32.totalorder %s217, %s219
      %p223 = scmp.eq.s32.totalorder %s31, 0
      %p224 = por %p222, %p223
      %p225 = scmp.ne.s32.totalorder %s217, %s219
      %p226 = scmp.eq.s32.totalorder %s36, 1
      %p227 = por %p225, %p226
      %p228 = scmp.ne.s32.totalorder %s219, %s220
      %p229 = scmp.eq.s32.totalorder %s36, 0
      %p230 = por %p228, %p229
      %p231 = scmp.ne.s32.totalorder %s219, %s220
      %p232 = scmp.eq.s32.totalorder %s37, 1
      %p233 = por %p231, %p232
      %p235 = scmp.ne.s32.totalorder %s220, %s234
      %p236 = scmp.eq.s32.totalorder %s37, 0
      %p237 = por %p235, %p236
      %s239 = sadd.s32 %s238, 1
      %p242 = scmp.eq.s32.totalorder %s31, 1
      %p243 = scmp.ne.s32.totalorder %s238, %s240
      %p244 = scmp.eq.s32.totalorder %s31, 0
      %p245 = por %p243, %p244
      %p246 = scmp.ne.s32.totalorder %s238, %s240
      %p247 = scmp.eq.s32.totalorder %s36, 1
      %p248 = por %p246, %p247
      %p249 = scmp.ne.s32.totalorder %s240, %s241
      %p250 = scmp.eq.s32.totalorder %s36, 0
      %p251 = por %p249, %p250
      %p252 = scmp.ne.s32.totalorder %s240, %s241
      %p253 = scmp.eq.s32.totalorder %s37, 1
      %p254 = por %p252, %p253
      %p256 = scmp.ne.s32.totalorder %s241, %s255
      %p257 = scmp.eq.s32.totalorder %s37, 0
      %p258 = por %p256, %p257
      %s260 = sadd.s32 %s259, 1
      %p263 = scmp.eq.s32.totalorder %s31, 1
      %p264 = scmp.ne.s32.totalorder %s259, %s261
      %p265 = scmp.eq.s32.totalorder %s31, 0
      %p266 = por %p264, %p265
      %p267 = scmp.ne.s32.totalorder %s259, %s261
      %p268 = scmp.eq.s32.totalorder %s36, 1
      %p269 = por %p267, %p268
      %p270 = scmp.ne.s32.totalorder %s261, %s262
      %p271 = scmp.eq.s32.totalorder %s36, 0
      %p272 = por %p270, %p271
      %p273 = scmp.ne.s32.totalorder %s261, %s262
      %p274 = scmp.eq.s32.totalorder %s37, 1
      %p275 = por %p273, %p274
      %p277 = scmp.ne.s32.totalorder %s262, %s276
      %p278 = scmp.eq.s32.totalorder %s37, 0
      %p279 = por %p277, %p278
      %s281 = sadd.s32 %s280, 1
      %p284 = scmp.eq.s32.totalorder %s31, 1
      %p285 = scmp.ne.s32.totalorder %s280, %s282
      %p286 = scmp.eq.s32.totalorder %s31, 0
      %p287 = por %p285, %p286
      %p288 = scmp.ne.s32.totalorder %s280, %s282
      %p289 = scmp.eq.s32.totalorder %s36, 1
      %p290 = por %p288, %p289
      %p291 = scmp.ne.s32.totalorder %s282, %s283
      %p292 = scmp.eq.s32.totalorder %s36, 0
      %p293 = por %p291, %p292
      %p294 = scmp.ne.s32.totalorder %s282, %s283
      %p295 = scmp.eq.s32.totalorder %s37, 1
      %p296 = por %p294, %p295
      %p298 = scmp.ne.s32.totalorder %s283, %s297
      %p299 = scmp.eq.s32.totalorder %s37, 0
      %p300 = por %p298, %p299
      %s302 = sadd.s32 %s301, 1
      %p305 = scmp.eq.s32.totalorder %s31, 1
      %p306 = scmp.ne.s32.totalorder %s301, %s303
      %p307 = scmp.eq.s32.totalorder %s31, 0
      %p308 = por %p306, %p307
      %p309 = scmp.ne.s32.totalorder %s301, %s303
      %p310 = scmp.eq.s32.totalorder %s36, 1
      %p311 = por %p309, %p310
      %p312 = scmp.ne.s32.totalorder %s303, %s304
      %p313 = scmp.eq.s32.totalorder %s36, 0
      %p314 = por %p312, %p313
      %p315 = scmp.ne.s32.totalorder %s303, %s304
      %p316 = scmp.eq.s32.totalorder %s37, 1
      %p317 = por %p315, %p316
      %p319 = scmp.ne.s32.totalorder %s304, %s318
      %p320 = scmp.eq.s32.totalorder %s37, 0
      %p321 = por %p319, %p320
      %s323 = sadd.s32 %s322, 1
      %p326 = scmp.eq.s32.totalorder %s31, 1
      %p327 = scmp.ne.s32.totalorder %s322, %s324
      %p328 = scmp.eq.s32.totalorder %s31, 0
      %p329 = por %p327, %p328
      %p330 = scmp.ne.s32.totalorder %s322, %s324
      %p331 = scmp.eq.s32.totalorder %s36, 1
      %p332 = por %p330, %p331
      %p333 = scmp.ne.s32.totalorder %s324, %s325
      %p334 = scmp.eq.s32.totalorder %s36, 0
      %p335 = por %p333, %p334
      %p336 = scmp.ne.s32.totalorder %s324, %s325
      %p337 = scmp.eq.s32.totalorder %s37, 1
      %p338 = por %p336, %p337
      %p340 = scmp.ne.s32.totalorder %s325, %s339
      %p341 = scmp.eq.s32.totalorder %s37, 0
      %p342 = por %p340, %p341
      %s343 = ssub.s32 %s31, %s38
      %p344 = scmp.eq.s32.totalorder %s343, 0
      %s346 = sadd.s32 %s345, 1
      %s347 = scalar_select %p344, %s345, %s346
      %p350 = pneg %p344
      %p351 = scmp.eq.s32.totalorder %s31, 1
      %p352 = por %p350, %p351
      %p353 = scmp.ne.s32.totalorder %s345, %s348
      %p354 = scmp.eq.s32.totalorder %s31, 0
      %p355 = por %p353, %p354
      %p356 = scmp.ne.s32.totalorder %s345, %s348
      %p357 = scmp.eq.s32.totalorder %s36, 1
      %p358 = por %p356, %p357
      %p359 = scmp.ne.s32.totalorder %s348, %s349
      %p360 = scmp.eq.s32.totalorder %s36, 0
      %p361 = por %p359, %p360
      %p362 = scmp.ne.s32.totalorder %s348, %s349
      %p363 = scmp.eq.s32.totalorder %s37, 1
      %p364 = por %p362, %p363
      %p366 = scmp.ne.s32.totalorder %s349, %s365
      %p367 = scmp.eq.s32.totalorder %s37, 0
      %p368 = por %p366, %p367
      %p369 = scmp.le.s32.totalorder 1, %s31
      %p370 = scmp.lt.s32.totalorder %s31, 3
      %p371 = pnand %p369, %p370
      %p372 = pneg %p371
      // Predicated region
      $region9: #{tpu_custom_call.1} parent=5 // pred_check
        _
      $region10: #{tpu_custom_call.1} parent=5 // pred_check_branch
        %374 = sbr.rel (%p371) target = $region12
      $region11: #{tpu_custom_call.1} parent=5 // pred_region
        %s375 = ssub.s32 %s31, 1
        // Predicated region
        $region13: #{tpu_custom_call.1} parent=11 // pred_check
          %p376 = pneg %p104
        $region14: #{tpu_custom_call.1} parent=11 // pred_check_branch
          %378 = sbr.rel (%p376) target = $region16
        $region15: #{tpu_custom_call.1} parent=11 // pred_region
          %s380 = ssub.s32 256, 256
          %381 = vsyncadd [#allocation7], %s380
          %s382 = sshll.u32 [#allocation8], 4
          %s383 = int_to_ptr.vmem [resolvable:$true] %s382
          %388 = dma.hbm_to_vmem [thread:$0]  %s2, 256, %s383, [#allocation7], 64, 64, 4
        $region16: #{tpu_custom_call.1} parent=11 // pred_fallthru
          _
        // Predicated region
        $region17: #{tpu_custom_call.1} parent=11 // pred_check
          %p389 = pneg %p125
        $region18: #{tpu_custom_call.1} parent=11 // pred_check_branch
          %391 = sbr.rel (%p389) target = $region20
        $region19: #{tpu_custom_call.1} parent=11 // pred_region
          %s393 = ssub.s32 256, 256
          %394 = vsyncadd [#allocation10], %s393
          %s395 = sshll.u32 [#allocation9], 4
          %s396 = int_to_ptr.vmem [resolvable:$true] %s395
          %401 = dma.hbm_to_vmem [thread:$0]  %s3, 256, %s396, [#allocation10], 64, 64, 4
        $region20: #{tpu_custom_call.1} parent=11 // pred_fallthru
          _
        // Predicated region
        $region21: #{tpu_custom_call.1} parent=11 // pred_check
          %p402 = pneg %p146
        $region22: #{tpu_custom_call.1} parent=11 // pred_check_branch
          %404 = sbr.rel (%p402) target = $region24
        $region23: #{tpu_custom_call.1} parent=11 // pred_region
          %s406 = ssub.s32 256, 256
          %407 = vsyncadd [#allocation10], %s406
          %s408 = sshll.u32 [#allocation11], 4
          %s409 = int_to_ptr.vmem [resolvable:$true] %s408
          %414 = dma.hbm_to_vmem [thread:$0]  %s4, 256, %s409, [#allocation10], 64, 64, 4
        $region24: #{tpu_custom_call.1} parent=11 // pred_fallthru
          _
        // Predicated region
        $region25: #{tpu_custom_call.1} parent=11 // pred_check
          %p415 = pneg %p167
        $region26: #{tpu_custom_call.1} parent=11 // pred_check_branch
          %417 = sbr.rel (%p415) target = $region28
        $region27: #{tpu_custom_call.1} parent=11 // pred_region
          _
        $region28: #{tpu_custom_call.1} parent=11 // pred_fallthru
          _
        // Predicated region
        $region29: #{tpu_custom_call.1} parent=11 // pred_check
          %p418 = pneg %p188
        $region30: #{tpu_custom_call.1} parent=11 // pred_check_branch
          %420 = sbr.rel (%p418) target = $region32
        $region31: #{tpu_custom_call.1} parent=11 // pred_region
          _
        $region32: #{tpu_custom_call.1} parent=11 // pred_fallthru
          _
        // Predicated region
        $region33: #{tpu_custom_call.1} parent=11 // pred_check
          %p421 = pneg %p209
        $region34: #{tpu_custom_call.1} parent=11 // pred_check_branch
          %423 = sbr.rel (%p421) target = $region36
        $region35: #{tpu_custom_call.1} parent=11 // pred_region
          %s425 = ssub.s32 16, 16
          %426 = vsyncadd [#allocation13], %s425
          %s428 = sshll.u32 [#allocation12], 4
          %s429 = int_to_ptr.vmem [resolvable:$true] %s428
          %431 = dma.hbm_to_vmem [thread:$0]  %s7, 16, %s429, [#allocation13]
        $region36: #{tpu_custom_call.1} parent=11 // pred_fallthru
          _
        // Predicated region
        $region37: #{tpu_custom_call.1} parent=11 // pred_check
          %p432 = pneg %p230
        $region38: #{tpu_custom_call.1} parent=11 // pred_check_branch
          %434 = sbr.rel (%p432) target = $region40
        $region39: #{tpu_custom_call.1} parent=11 // pred_region
          _
        $region40: #{tpu_custom_call.1} parent=11 // pred_fallthru
          _
        // Predicated region
        $region41: #{tpu_custom_call.1} parent=11 // pred_check
          %p435 = pneg %p251
        $region42: #{tpu_custom_call.1} parent=11 // pred_check_branch
          %437 = sbr.rel (%p435) target = $region44
        $region43: #{tpu_custom_call.1} parent=11 // pred_region
          %s439 = ssub.s32 16, 16
          %440 = vsyncadd [#allocation13], %s439
          %s442 = sshll.u32 [#allocation14], 4
          %s443 = int_to_ptr.vmem [resolvable:$true] %s442
          %445 = dma.hbm_to_vmem [thread:$0]  %s9, 16, %s443, [#allocation13]
        $region44: #{tpu_custom_call.1} parent=11 // pred_fallthru
          _
        // Predicated region
        $region45: #{tpu_custom_call.1} parent=11 // pred_check
          %p446 = pneg %p272
        $region46: #{tpu_custom_call.1} parent=11 // pred_check_branch
          %448 = sbr.rel (%p446) target = $region48
        $region47: #{tpu_custom_call.1} parent=11 // pred_region
          _
        $region48: #{tpu_custom_call.1} parent=11 // pred_fallthru
          _
        // Predicated region
        $region49: #{tpu_custom_call.1} parent=11 // pred_check
          %p449 = pneg %p293
        $region50: #{tpu_custom_call.1} parent=11 // pred_check_branch
          %451 = sbr.rel (%p449) target = $region52
        $region51: #{tpu_custom_call.1} parent=11 // pred_region
          _
        $region52: #{tpu_custom_call.1} parent=11 // pred_fallthru
          _
        // Predicated region
        $region53: #{tpu_custom_call.1} parent=11 // pred_check
          %p452 = pneg %p314
        $region54: #{tpu_custom_call.1} parent=11 // pred_check_branch
          %454 = sbr.rel (%p452) target = $region56
        $region55: #{tpu_custom_call.1} parent=11 // pred_region
          _
        $region56: #{tpu_custom_call.1} parent=11 // pred_fallthru
          _
        // Predicated region
        $region57: #{tpu_custom_call.1} parent=11 // pred_check
          %p455 = pneg %p335
        $region58: #{tpu_custom_call.1} parent=11 // pred_check_branch
          %457 = sbr.rel (%p455) target = $region60
        $region59: #{tpu_custom_call.1} parent=11 // pred_region
          _
        $region60: #{tpu_custom_call.1} parent=11 // pred_fallthru
          _
      $region12: #{tpu_custom_call.1} parent=5 // pred_fallthru
        _
      %p458 = scmp.lt.s32.totalorder %s31, 2
      // Predicated region
      $region61: #{tpu_custom_call.1} parent=5 // pred_check
        %p459 = pneg %p458
      $region62: #{tpu_custom_call.1} parent=5 // pred_check_branch
        %461 = sbr.rel (%p459) target = $region64
      $region63: #{tpu_custom_call.1} parent=5 // pred_region
        // Predicated region
        $region65: #{tpu_custom_call.1} parent=63 // pred_check
          %p462 = pneg %p51
        $region66: #{tpu_custom_call.1} parent=63 // pred_check_branch
          %464 = sbr.rel (%p462) target = $region68
        $region67: #{tpu_custom_call.1} parent=63 // pred_region
          %s465 = sand.u32 %s41, 1
          %s466 = scalar_lea.sflag [#allocation4], %s465
          %s467 = sand.u32 %s41, 1
          %s468 = smul.addr %s467, 8
          %s469 = scalar_lea.vmem [#allocation3], %s468
          %s471 = ssub.s32 128, 128
          %472 = vsyncadd %s466, %s471
          %s473 = smul.addr %s31, 128
          %s474 = scalar_lea.hbm %s0, %s473
          %s476 = sshll.u32 %s469, 4
          %s477 = int_to_ptr.vmem [resolvable:$true] %s476
          %479 = dma.hbm_to_vmem [thread:$0]  %s474, 128, %s477, %s466
        $region68: #{tpu_custom_call.1} parent=63 // pred_fallthru
          _
        // Predicated region
        $region69: #{tpu_custom_call.1} parent=63 // pred_check
          %p480 = pneg %p77
        $region70: #{tpu_custom_call.1} parent=63 // pred_check_branch
          %482 = sbr.rel (%p480) target = $region72
        $region71: #{tpu_custom_call.1} parent=63 // pred_region
          %s483 = sand.u32 %s31, 1
          %s484 = scalar_lea.sflag [#allocation7], %s483
          %s485 = sand.u32 %s67, 1
          %s486 = smul.addr %s485, 8
          %s487 = scalar_lea.vmem [#allocation6], %s486
          %s489 = ssub.s32 128, 128
          %490 = vsyncadd %s484, %s489
          %s491 = smul.addr %s31, 8
          %s492 = smul.addr %s491, 16
          %s493 = scalar_lea.hbm %s1, %s492
          %s494 = sshll.u32 %s487, 4
          %s495 = int_to_ptr.vmem [resolvable:$true] %s494
          %500 = dma.hbm_to_vmem [thread:$0]  %s493, 128, %s495, %s484, 16, 16, 1
        $region72: #{tpu_custom_call.1} parent=63 // pred_fallthru
          _
      $region64: #{tpu_custom_call.1} parent=5 // pred_fallthru
        _
      %p501 = scmp.le.s32.totalorder 1, %s31
      %p502 = scmp.lt.s32.totalorder %s31, 3
      %p503 = pnand %p501, %p502
      %p504 = pneg %p503
      // Predicated region
      $region73: #{tpu_custom_call.1} parent=5 // pred_check
        _
      $region74: #{tpu_custom_call.1} parent=5 // pred_check_branch
        %506 = sbr.rel (%p503) target = $region76
      $region75: #{tpu_custom_call.1} parent=5 // pred_region
        %s507 = ssub.s32 %s31, 1
        %s508 = sand.u32 %s44, 1
        %s509 = scalar_lea.sflag [#allocation4], %s508
        %s510 = sand.u32 %s44, 1
        %s511 = smul.addr %s510, 8
        %s512 = scalar_lea.vmem [#allocation3], %s511
        // Predicated region
        $region77: #{tpu_custom_call.1} parent=75 // pred_check
          %p513 = pneg %p57
        $region78: #{tpu_custom_call.1} parent=75 // pred_check_branch
          %515 = sbr.rel (%p513) target = $region80
        $region79: #{tpu_custom_call.1} parent=75 // pred_region
          %516 = dma.done %s509, 128
        $region80: #{tpu_custom_call.1} parent=75 // pred_fallthru
          _
        %s517 = sand.u32 %s36, 1
        %s518 = scalar_lea.sflag [#allocation7], %s517
        %s519 = sand.u32 %s70, 1
        %s520 = smul.addr %s519, 8
        %s521 = scalar_lea.vmem [#allocation6], %s520
        // Predicated region
        $region81: #{tpu_custom_call.1} parent=75 // pred_check
          %p522 = pneg %p83
        $region82: #{tpu_custom_call.1} parent=75 // pred_check_branch
          %524 = sbr.rel (%p522) target = $region84
        $region83: #{tpu_custom_call.1} parent=75 // pred_region
          %525 = dma.done %s518, 128
        $region84: #{tpu_custom_call.1} parent=75 // pred_fallthru
          _
        // Predicated region
        $region85: #{tpu_custom_call.1} parent=75 // pred_check
          %p526 = pneg %p104
        $region86: #{tpu_custom_call.1} parent=75 // pred_check_branch
          %528 = sbr.rel (%p526) target = $region88
        $region87: #{tpu_custom_call.1} parent=75 // pred_region
          %529 = dma.done [#allocation7], 256
        $region88: #{tpu_custom_call.1} parent=75 // pred_fallthru
          _
        // Predicated region
        $region89: #{tpu_custom_call.1} parent=75 // pred_check
          %p530 = pneg %p125
        $region90: #{tpu_custom_call.1} parent=75 // pred_check_branch
          %532 = sbr.rel (%p530) target = $region92
        $region91: #{tpu_custom_call.1} parent=75 // pred_region
          %533 = dma.done [#allocation10], 256
        $region92: #{tpu_custom_call.1} parent=75 // pred_fallthru
          _
        // Predicated region
        $region93: #{tpu_custom_call.1} parent=75 // pred_check
          %p534 = pneg %p146
        $region94: #{tpu_custom_call.1} parent=75 // pred_check_branch
          %536 = sbr.rel (%p534) target = $region96
        $region95: #{tpu_custom_call.1} parent=75 // pred_region
          %537 = dma.done [#allocation10], 256
        $region96: #{tpu_custom_call.1} parent=75 // pred_fallthru
          _
        // Predicated region
        $region97: #{tpu_custom_call.1} parent=75 // pred_check
          %p538 = pneg %p209
        $region98: #{tpu_custom_call.1} parent=75 // pred_check_branch
          %540 = sbr.rel (%p538) target = $region100
        $region99: #{tpu_custom_call.1} parent=75 // pred_region
          %541 = dma.done [#allocation13], 16
        $region100: #{tpu_custom_call.1} parent=75 // pred_fallthru
          _
        // Predicated region
        $region101: #{tpu_custom_call.1} parent=75 // pred_check
          %p542 = pneg %p251
        $region102: #{tpu_custom_call.1} parent=75 // pred_check_branch
          %544 = sbr.rel (%p542) target = $region104
        $region103: #{tpu_custom_call.1} parent=75 // pred_region
          %545 = dma.done [#allocation13], 16
        $region104: #{tpu_custom_call.1} parent=75 // pred_fallthru
          _
        %s546 = sand.u32 %s44, 1
        %s547 = scalar_lea.sflag [#allocation4], %s546
        %s548 = sand.u32 %s44, 1
        %s549 = smul.addr %s548, 8
        %s550 = scalar_lea.vmem [#allocation3], %s549
        %p551 = pneg %p57
        %p552 = pneg %p54
        %s553 = sand.u32 %s36, 1
        %s554 = scalar_lea.sflag [#allocation7], %s553
        %s555 = sand.u32 %s70, 1
        %s556 = smul.addr %s555, 8
        %s557 = scalar_lea.vmem [#allocation6], %s556
        %p558 = pneg %p83
        %p559 = pneg %p80
        %p560 = pneg %p104
        %p561 = pneg %p101
        %p562 = pneg %p125
        %p563 = pneg %p122
        %p564 = pneg %p146
        %p565 = pneg %p143
        %p566 = pneg %p167
        %p567 = pneg %p164
        %p568 = pneg %p188
        %p569 = pneg %p185
        %p570 = pneg %p209
        %p571 = pneg %p206
        %p572 = pneg %p230
        %p573 = pneg %p227
        %p574 = pneg %p251
        %p575 = pneg %p248
        %p576 = pneg %p272
        %p577 = pneg %p269
        %p578 = pneg %p293
        %p579 = pneg %p290
        %p580 = pneg %p314
        %p581 = pneg %p311
        %p582 = pneg %p335
        %p583 = pneg %p332
        %p584 = pneg %p361
        %p585 = pneg %p358
        %s586 = sand.u32 %s348, 1
        %s587 = scalar_lea.sflag [#allocation5], %s586
        %s588 = sand.u32 %s348, 1
        %s589 = smul.addr %s588, 8
        %s590 = scalar_lea.vmem [#allocation15], %s589
        %v592 = vld [vmem:[%s512] sm:$0xff]
        %v593 = vld [vmem:[%s5] sm:$0x1]
        %v594 = vld [vmem:[%s6] sm:$0x1]
        %v595 = vld [vmem:[#allocation12] sm:$0x1]
        %v596 = vld [vmem:[#allocation14] sm:$0x1]
        %v597 = vld [vmem:[%s11] sm:$0x1]
        %v598 = vld [vmem:[%s12] sm:$0x1]
        %v599 = vld [vmem:[%s13] sm:$0x1]
        %v600 = vld [vmem:[%s521] sm:$0x1]
        %v601 = vld [vmem:[%s521 + $0x1] sm:$0x1]
        %v602 = vld [vmem:[%s521 + $0x2] sm:$0x1]
        %v603 = vld [vmem:[%s521 + $0x3] sm:$0x1]
        %v604 = vld [vmem:[%s521 + $0x4] sm:$0x1]
        %v605 = vld [vmem:[%s521 + $0x5] sm:$0x1]
        %v606 = vld [vmem:[%s521 + $0x6] sm:$0x1]
        %v607 = vld [vmem:[%s521 + $0x7] sm:$0x1]
        %v608 = vadd.f32 %v600, 0.0
        %v609 = vadd.f32 %v601, 0.0
        %v610 = vadd.f32 %v602, 0.0
        %v611 = vadd.f32 %v603, 0.0
        %v612 = vadd.f32 %v604, 0.0
        %v613 = vadd.f32 %v605, 0.0
        %v614 = vadd.f32 %v606, 0.0
        %v615 = vadd.f32 %v607, 0.0
        %v624 = vcombine.low %v608, %v609
        %v625 = vcombine.low %v610, %v611
        %v626 = vcombine.low %v612, %v613
        %v627 = vcombine.low %v614, %v615
        %v629 = vunpack.c.l.s4 1966171168
        %v630 = vunpack.c.0.s8 %v629
        %v631 = vlaneseq
        %v632 = vshrl.u32 %v631, 7
        %v633 = vsub.s32 %v630, %v632
        %v634 = vrot.slane %v624, %v633
        %v636 = vunpack.c.l.s4 1966171168
        %v637 = vunpack.c.0.s8 %v636
        %v638 = vlaneseq
        %v639 = vshrl.u32 %v638, 7
        %v640 = vsub.s32 %v637, %v639
        %v641 = vrot.slane %v625, %v640
        %v643 = vunpack.c.l.s4 1966171168
        %v644 = vunpack.c.0.s8 %v643
        %v645 = vlaneseq
        %v646 = vshrl.u32 %v645, 7
        %v647 = vsub.s32 %v644, %v646
        %v648 = vrot.slane %v626, %v647
        %v650 = vunpack.c.l.s4 1966171168
        %v651 = vunpack.c.0.s8 %v650
        %v652 = vlaneseq
        %v653 = vshrl.u32 %v652, 7
        %v654 = vsub.s32 %v651, %v653
        %v655 = vrot.slane %v627, %v654
        %v656 = vcombine.low %v634, %v641
        %v657 = vcombine.low %v648, %v655
        %v659 = vunpack.c.l.s4 1966171168
        %v660 = vunpack.c.0.s8 %v659
        %v661 = vlaneseq
        %v662 = vshrl.u32 %v661, 7
        %v663 = vsub.s32 %v660, %v662
        %v664 = vrot.slane %v656, %v663
        %v666 = vunpack.c.l.s4 1966171168
        %v667 = vunpack.c.0.s8 %v666
        %v668 = vlaneseq
        %v669 = vshrl.u32 %v668, 7
        %v670 = vsub.s32 %v667, %v669
        %v671 = vrot.slane %v657, %v670
        %v672 = vcombine.low %v664, %v671
        %v674 = vadd.f32 %v592, %v672
        %v675 = vmul.f32 %v674, 0.5
        %v676 = vpack.c.bf16 %v675, %v675
        %v677 = vld [vmem:[#allocation8] sm:$0xf]
        %v678 = vld [vmem:[#allocation8 + $0x4] sm:$0xf]
        %v679 = vld [vmem:[#allocation8 + $0x8] sm:$0xf]
        %v680 = vld [vmem:[#allocation8 + $0xc] sm:$0xf]
        %v685 = vunpack.c.l.b16 %v677
        %v686 = vunpack.c.l.b16 %v678
        %v687 = vunpack.c.l.b16 %v679
        %v688 = vunpack.c.l.b16 %v680
        %v689 = vpack.c.b16 %v686, %v685
        %v690 = vpack.c.b16 %v688, %v687
        %vm693 = vcmask 261120
        %v695 = vsel %vm693, %v676, 0
        %697 = vmatprep.subr.bf16.mxu0 0
        %698 = vmatpush1.bf16.msra.mxu0 %v689
        %699 = vmatprep.subr.bf16.mxu0 0
        %700 = vmatpush1.bf16.msra.mxu0 %v690
        %701 = vmatprep.subr.bf16.mxu0 0
        %702 = vmatpush1.bf16.msra.mxu0 0
        %703 = vmatprep.subr.bf16.mxu0 0
        %704 = vmatpush1.bf16.msra.mxu0 0
        %705 = vmatprep.subr.bf16.mxu0 0
        %706 = vmatpush1.bf16.msra.mxu0 0
        %707 = vmatprep.subr.bf16.mxu0 0
        %708 = vmatpush1.bf16.msra.mxu0 0
        %709 = vmatprep.subr.bf16.mxu0 0
        %710 = vmatpush1.bf16.msra.mxu0 0
        %711 = vmatprep.subr.bf16.mxu0 0
        %712 = vmatpush1.bf16.msra.mxu0 0
        %713 = vmatprep.subr.bf16.mxu0 0
        %714 = vmatpush1.bf16.msra.mxu0 0
        %715 = vmatprep.subr.bf16.mxu0 0
        %716 = vmatpush1.bf16.msra.mxu0 0
        %717 = vmatprep.subr.bf16.mxu0 0
        %718 = vmatpush1.bf16.msra.mxu0 0
        %719 = vmatprep.subr.bf16.mxu0 0
        %720 = vmatpush1.bf16.msra.mxu0 0
        %721 = vmatprep.subr.bf16.mxu0 0
        %722 = vmatpush1.bf16.msra.mxu0 0
        %723 = vmatprep.subr.bf16.mxu0 0
        %724 = vmatpush1.bf16.msra.mxu0 0
        %725 = vmatprep.subr.bf16.mxu0 0
        %726 = vmatpush1.bf16.msra.mxu0 0
        %727 = vmatprep.subr.bf16.mxu0 0
        %728 = vmatpush1.bf16.msra.mxu0 0
        %729 = vmatprep.mubr.bf16.mxu0 0
        %730 = vmatmul.mubr.bf16.gmra.mrb[0].mxu0 %v695
        %v731 = vpop.f32.mrb[0].mxu0
        %v732 = vadd.f32 0.0, %v731
        %v733 = vpop.f32.mrb[0].mxu0
        %v734 = vpop.f32.mrb[0].mxu0
        %v735 = vpop.f32.mrb[0].mxu0
        %736 = vdwg.mxu0
        %v737 = vpack.c.bf16 %v592, %v592
        %v738 = vld [vmem:[#allocation9] sm:$0xf]
        %v739 = vld [vmem:[#allocation9 + $0x4] sm:$0xf]
        %v740 = vld [vmem:[#allocation9 + $0x8] sm:$0xf]
        %v741 = vld [vmem:[#allocation9 + $0xc] sm:$0xf]
        %v746 = vunpack.c.l.b16 %v738
        %v747 = vunpack.c.l.b16 %v739
        %v748 = vunpack.c.l.b16 %v740
        %v749 = vunpack.c.l.b16 %v741
        %v750 = vpack.c.b16 %v747, %v746
        %v751 = vpack.c.b16 %v749, %v748
        %v755 = vsel %vm693, %v737, 0
        %757 = vmatprep.subr.bf16.mxu0 0
        %758 = vmatpush1.bf16.msra.mxu0 %v750
        %759 = vmatprep.subr.bf16.mxu0 0
        %760 = vmatpush1.bf16.msra.mxu0 %v751
        %761 = vmatprep.subr.bf16.mxu0 0
        %762 = vmatpush1.bf16.msra.mxu0 0
        %763 = vmatprep.subr.bf16.mxu0 0
        %764 = vmatpush1.bf16.msra.mxu0 0
        %765 = vmatprep.subr.bf16.mxu0 0
        %766 = vmatpush1.bf16.msra.mxu0 0
        %767 = vmatprep.subr.bf16.mxu0 0
        %768 = vmatpush1.bf16.msra.mxu0 0
        %769 = vmatprep.subr.bf16.mxu0 0
        %770 = vmatpush1.bf16.msra.mxu0 0
        %771 = vmatprep.subr.bf16.mxu0 0
        %772 = vmatpush1.bf16.msra.mxu0 0
        %773 = vmatprep.subr.bf16.mxu0 0
        %774 = vmatpush1.bf16.msra.mxu0 0
        %775 = vmatprep.subr.bf16.mxu0 0
        %776 = vmatpush1.bf16.msra.mxu0 0
        %777 = vmatprep.subr.bf16.mxu0 0
        %778 = vmatpush1.bf16.msra.mxu0 0
        %779 = vmatprep.subr.bf16.mxu0 0
        %780 = vmatpush1.bf16.msra.mxu0 0
        %781 = vmatprep.subr.bf16.mxu0 0
        %782 = vmatpush1.bf16.msra.mxu0 0
        %783 = vmatprep.subr.bf16.mxu0 0
        %784 = vmatpush1.bf16.msra.mxu0 0
        %785 = vmatprep.subr.bf16.mxu0 0
        %786 = vmatpush1.bf16.msra.mxu0 0
        %787 = vmatprep.subr.bf16.mxu0 0
        %788 = vmatpush1.bf16.msra.mxu0 0
        %789 = vmatprep.mubr.bf16.mxu0 0
        %790 = vmatmul.mubr.bf16.gmra.mrb[0].mxu0 %v755
        %v791 = vpop.f32.mrb[0].mxu0
        %v792 = vadd.f32 0.0, %v791
        %v793 = vpop.f32.mrb[0].mxu0
        %v794 = vpop.f32.mrb[0].mxu0
        %v795 = vpop.f32.mrb[0].mxu0
        %796 = vdwg.mxu0
        %v797 = vmul.f32 %v732, 0.17677669
        %v798 = vpack.c.bf16 %v797, %v797
        %v799 = vpack.c.bf16 %v732, %v732
        %v800 = vpack.c.bf16 %v792, %v792
        %802 = vrot.lane.b32.xlu0 %v799, 96
        %v803 = vpop.permute.xlu0 %802
        %vm804 = vcmask 64512
        %v806 = vsel %vm804, %v798, 0
        %v809 = vsel %vm804, %v803, 0
        %811 = vmatprep.subr.bf16.mxu0 0
        %812 = vmatpush1.bf16.xpose.msra.mxu0 %v809
        %813 = vmatprep.subr.bf16.mxu0 0
        %814 = vmatpush1.bf16.xpose.msra.mxu0 0
        %815 = vmatprep.subr.bf16.mxu0 0
        %816 = vmatpush1.bf16.xpose.msra.mxu0 0
        %817 = vmatprep.subr.bf16.mxu0 0
        %818 = vmatpush1.bf16.xpose.msra.mxu0 0
        %819 = vmatprep.subr.bf16.mxu0 0
        %820 = vmatpush1.bf16.xpose.msra.mxu0 0
        %821 = vmatprep.subr.bf16.mxu0 0
        %822 = vmatpush1.bf16.xpose.msra.mxu0 0
        %823 = vmatprep.subr.bf16.mxu0 0
        %824 = vmatpush1.bf16.xpose.msra.mxu0 0
        %825 = vmatprep.subr.bf16.mxu0 0
        %826 = vmatpush1.bf16.xpose.msra.mxu0 0
        %827 = vmatprep.subr.bf16.mxu0 0
        %828 = vmatpush1.bf16.xpose.msra.mxu0 0
        %829 = vmatprep.subr.bf16.mxu0 0
        %830 = vmatpush1.bf16.xpose.msra.mxu0 0
        %831 = vmatprep.subr.bf16.mxu0 0
        %832 = vmatpush1.bf16.xpose.msra.mxu0 0
        %833 = vmatprep.subr.bf16.mxu0 0
        %834 = vmatpush1.bf16.xpose.msra.mxu0 0
        %835 = vmatprep.subr.bf16.mxu0 0
        %836 = vmatpush1.bf16.xpose.msra.mxu0 0
        %837 = vmatprep.subr.bf16.mxu0 0
        %838 = vmatpush1.bf16.xpose.msra.mxu0 0
        %839 = vmatprep.subr.bf16.mxu0 0
        %840 = vmatpush1.bf16.xpose.msra.mxu0 0
        %841 = vmatprep.subr.bf16.mxu0 0
        %842 = vmatpush1.bf16.xpose.msra.mxu0 0
        %843 = vmatprep.mubr.bf16.mxu0 0
        %844 = vmatmul.mubr.bf16.gmra.mrb[0].mxu0 %v806
        %v845 = vpop.f32.mrb[0].mxu0
        %v846 = vadd.f32 0.0, %v845
        %v847 = vpop.f32.mrb[0].mxu0
        %v848 = vpop.f32.mrb[0].mxu0
        %v849 = vpop.f32.mrb[0].mxu0
        %850 = vdwg.mxu0
        %v851 = vsel %vm804, %v846, -inf
        %852 = vmax.xlane.f32.xlu0 %v851
        %v853 = vpop.xlane.xlu0 %852
        %v854 = vsub.f32 %v846, %v853
        %v855 = vmul.f32 %v854, 1.442695
        %v856 = vpow.pop %v855
        %v857 = vsel %vm804, %v856, 0.0
        %858 = vadd.xlane.f32.xlu0 %v857
        %v859 = vpop.xlane.xlu0 %858
        %v860 = vrcp.pop %v859
        %v861 = vmul.f32 %v856, %v860
        %v862 = vpack.c.bf16 %v861, %v861
        %v864 = vsel %vm804, %v862, 0
        %vm866 = vcmask 1043456
        %v868 = vsel %vm866, %v800, 0
        %870 = vmatprep.subr.bf16.mxu0 0
        %871 = vmatpush1.bf16.msra.mxu0 %v868
        %872 = vmatprep.subr.bf16.mxu0 0
        %873 = vmatpush1.bf16.msra.mxu0 0
        %874 = vmatprep.subr.bf16.mxu0 0
        %875 = vmatpush1.bf16.msra.mxu0 0
        %876 = vmatprep.subr.bf16.mxu0 0
        %877 = vmatpush1.bf16.msra.mxu0 0
        %878 = vmatprep.subr.bf16.mxu0 0
        %879 = vmatpush1.bf16.msra.mxu0 0
        %880 = vmatprep.subr.bf16.mxu0 0
        %881 = vmatpush1.bf16.msra.mxu0 0
        %882 = vmatprep.subr.bf16.mxu0 0
        %883 = vmatpush1.bf16.msra.mxu0 0
        %884 = vmatprep.subr.bf16.mxu0 0
        %885 = vmatpush1.bf16.msra.mxu0 0
        %886 = vmatprep.subr.bf16.mxu0 0
        %887 = vmatpush1.bf16.msra.mxu0 0
        %888 = vmatprep.subr.bf16.mxu0 0
        %889 = vmatpush1.bf16.msra.mxu0 0
        %890 = vmatprep.subr.bf16.mxu0 0
        %891 = vmatpush1.bf16.msra.mxu0 0
        %892 = vmatprep.subr.bf16.mxu0 0
        %893 = vmatpush1.bf16.msra.mxu0 0
        %894 = vmatprep.subr.bf16.mxu0 0
        %895 = vmatpush1.bf16.msra.mxu0 0
        %896 = vmatprep.subr.bf16.mxu0 0
        %897 = vmatpush1.bf16.msra.mxu0 0
        %898 = vmatprep.subr.bf16.mxu0 0
        %899 = vmatpush1.bf16.msra.mxu0 0
        %900 = vmatprep.subr.bf16.mxu0 0
        %901 = vmatpush1.bf16.msra.mxu0 0
        %902 = vmatprep.mubr.bf16.mxu0 0
        %903 = vmatmul.mubr.bf16.gmra.mrb[0].mxu0 %v864
        %v904 = vpop.f32.mrb[0].mxu0
        %v905 = vadd.f32 0.0, %v904
        %v906 = vpop.f32.mrb[0].mxu0
        %v907 = vpop.f32.mrb[0].mxu0
        %v908 = vpop.f32.mrb[0].mxu0
        %909 = vdwg.mxu0
        %910 = vst.msk [vmem:[#allocation2] sm:$0xff] %vm804, %v905
        %912 = vrot.lane.b32.xlu0 %v798, 120
        %v913 = vpop.permute.xlu0 %912
        %914 = vrot.lane.b32.xlu0 %v799, 88
        %v915 = vpop.permute.xlu0 %914
        %v917 = vsel %vm804, %v913, 0
        %v920 = vsel %vm804, %v915, 0
        %922 = vmatprep.subr.bf16.mxu0 0
        %923 = vmatpush1.bf16.xpose.msra.mxu0 %v920
        %924 = vmatprep.subr.bf16.mxu0 0
        %925 = vmatpush1.bf16.xpose.msra.mxu0 0
        %926 = vmatprep.subr.bf16.mxu0 0
        %927 = vmatpush1.bf16.xpose.msra.mxu0 0
        %928 = vmatprep.subr.bf16.mxu0 0
        %929 = vmatpush1.bf16.xpose.msra.mxu0 0
        %930 = vmatprep.subr.bf16.mxu0 0
        %931 = vmatpush1.bf16.xpose.msra.mxu0 0
        %932 = vmatprep.subr.bf16.mxu0 0
        %933 = vmatpush1.bf16.xpose.msra.mxu0 0
        %934 = vmatprep.subr.bf16.mxu0 0
        %935 = vmatpush1.bf16.xpose.msra.mxu0 0
        %936 = vmatprep.subr.bf16.mxu0 0
        %937 = vmatpush1.bf16.xpose.msra.mxu0 0
        %938 = vmatprep.subr.bf16.mxu0 0
        %939 = vmatpush1.bf16.xpose.msra.mxu0 0
        %940 = vmatprep.subr.bf16.mxu0 0
        %941 = vmatpush1.bf16.xpose.msra.mxu0 0
        %942 = vmatprep.subr.bf16.mxu0 0
        %943 = vmatpush1.bf16.xpose.msra.mxu0 0
        %944 = vmatprep.subr.bf16.mxu0 0
        %945 = vmatpush1.bf16.xpose.msra.mxu0 0
        %946 = vmatprep.subr.bf16.mxu0 0
        %947 = vmatpush1.bf16.xpose.msra.mxu0 0
        %948 = vmatprep.subr.bf16.mxu0 0
        %949 = vmatpush1.bf16.xpose.msra.mxu0 0
        %950 = vmatprep.subr.bf16.mxu0 0
        %951 = vmatpush1.bf16.xpose.msra.mxu0 0
        %952 = vmatprep.subr.bf16.mxu0 0
        %953 = vmatpush1.bf16.xpose.msra.mxu0 0
        %954 = vmatprep.mubr.bf16.mxu0 0
        %955 = vmatmul.mubr.bf16.gmra.mrb[0].mxu0 %v917
        %v956 = vpop.f32.mrb[0].mxu0
        %v957 = vadd.f32 0.0, %v956
        %v958 = vpop.f32.mrb[0].mxu0
        %v959 = vpop.f32.mrb[0].mxu0
        %v960 = vpop.f32.mrb[0].mxu0
        %961 = vdwg.mxu0
        %v962 = vsel %vm804, %v957, -inf
        %963 = vmax.xlane.f32.xlu0 %v962
        %v964 = vpop.xlane.xlu0 %963
        %v965 = vsub.f32 %v957, %v964
        %v966 = vmul.f32 %v965, 1.442695
        %v967 = vpow.pop %v966
        %v968 = vsel %vm804, %v967, 0.0
        %969 = vadd.xlane.f32.xlu0 %v968
        %v970 = vpop.xlane.xlu0 %969
        %v971 = vrcp.pop %v970
        %v972 = vmul.f32 %v967, %v971
        %v973 = vpack.c.bf16 %v972, %v972
        %975 = vrot.lane.b32.xlu0 %v800, 120
        %v976 = vpop.permute.xlu0 %975
        %v978 = vsel %vm804, %v973, 0
        %v981 = vsel %vm866, %v976, 0
        %983 = vmatprep.subr.bf16.mxu0 0
        %984 = vmatpush1.bf16.msra.mxu0 %v981
        %985 = vmatprep.subr.bf16.mxu0 0
        %986 = vmatpush1.bf16.msra.mxu0 0
        %987 = vmatprep.subr.bf16.mxu0 0
        %988 = vmatpush1.bf16.msra.mxu0 0
        %989 = vmatprep.subr.bf16.mxu0 0
        %990 = vmatpush1.bf16.msra.mxu0 0
        %991 = vmatprep.subr.bf16.mxu0 0
        %992 = vmatpush1.bf16.msra.mxu0 0
        %993 = vmatprep.subr.bf16.mxu0 0
        %994 = vmatpush1.bf16.msra.mxu0 0
        %995 = vmatprep.subr.bf16.mxu0 0
        %996 = vmatpush1.bf16.msra.mxu0 0
        %997 = vmatprep.subr.bf16.mxu0 0
        %998 = vmatpush1.bf16.msra.mxu0 0
        %999 = vmatprep.subr.bf16.mxu0 0
        %1000 = vmatpush1.bf16.msra.mxu0 0
        %1001 = vmatprep.subr.bf16.mxu0 0
        %1002 = vmatpush1.bf16.msra.mxu0 0
        %1003 = vmatprep.subr.bf16.mxu0 0
        %1004 = vmatpush1.bf16.msra.mxu0 0
        %1005 = vmatprep.subr.bf16.mxu0 0
        %1006 = vmatpush1.bf16.msra.mxu0 0
        %1007 = vmatprep.subr.bf16.mxu0 0
        %1008 = vmatpush1.bf16.msra.mxu0 0
        %1009 = vmatprep.subr.bf16.mxu0 0
        %1010 = vmatpush1.bf16.msra.mxu0 0
        %1011 = vmatprep.subr.bf16.mxu0 0
        %1012 = vmatpush1.bf16.msra.mxu0 0
        %1013 = vmatprep.subr.bf16.mxu0 0
        %1014 = vmatpush1.bf16.msra.mxu0 0
        %1015 = vmatprep.mubr.bf16.mxu0 0
        %1016 = vmatmul.mubr.bf16.gmra.mrb[0].mxu0 %v978
        %v1017 = vpop.f32.mrb[0].mxu0
        %v1018 = vadd.f32 0.0, %v1017
        %v1019 = vpop.f32.mrb[0].mxu0
        %v1020 = vpop.f32.mrb[0].mxu0
        %v1021 = vpop.f32.mrb[0].mxu0
        %1022 = vdwg.mxu0
        %1024 = vrot.lane.b32.xlu0 %v1018, 8
        %v1025 = vpop.permute.xlu0 %1024
        %vm1027 = vcmask 130112
        %1028 = vst.msk [vmem:[#allocation2] sm:$0xff] %vm1027, %v1025
        %1029 = vrot.lane.b32.xlu0 %v798, 112
        %v1030 = vpop.permute.xlu0 %1029
        %1031 = vrot.lane.b32.xlu0 %v799, 80
        %v1032 = vpop.permute.xlu0 %1031
        %v1034 = vsel %vm804, %v1030, 0
        %v1037 = vsel %vm804, %v1032, 0
        %1039 = vmatprep.subr.bf16.mxu0 0
        %1040 = vmatpush1.bf16.xpose.msra.mxu0 %v1037
        %1041 = vmatprep.subr.bf16.mxu0 0
        %1042 = vmatpush1.bf16.xpose.msra.mxu0 0
        %1043 = vmatprep.subr.bf16.mxu0 0
        %1044 = vmatpush1.bf16.xpose.msra.mxu0 0
        %1045 = vmatprep.subr.bf16.mxu0 0
        %1046 = vmatpush1.bf16.xpose.msra.mxu0 0
        %1047 = vmatprep.subr.bf16.mxu0 0
        %1048 = vmatpush1.bf16.xpose.msra.mxu0 0
        %1049 = vmatprep.subr.bf16.mxu0 0
        %1050 = vmatpush1.bf16.xpose.msra.mxu0 0
        %1051 = vmatprep.subr.bf16.mxu0 0
        %1052 = vmatpush1.bf16.xpose.msra.mxu0 0
        %1053 = vmatprep.subr.bf16.mxu0 0
        %1054 = vmatpush1.bf16.xpose.msra.mxu0 0
        %1055 = vmatprep.subr.bf16.mxu0 0
        %1056 = vmatpush1.bf16.xpose.msra.mxu0 0
        %1057 = vmatprep.subr.bf16.mxu0 0
        %1058 = vmatpush1.bf16.xpose.msra.mxu0 0
        %1059 = vmatprep.subr.bf16.mxu0 0
        %1060 = vmatpush1.bf16.xpose.msra.mxu0 0
        %1061 = vmatprep.subr.bf16.mxu0 0
        %1062 = vmatpush1.bf16.xpose.msra.mxu0 0
        %1063 = vmatprep.subr.bf16.mxu0 0
        %1064 = vmatpush1.bf16.xpose.msra.mxu0 0
        %1065 = vmatprep.subr.bf16.mxu0 0
        %1066 = vmatpush1.bf16.xpose.msra.mxu0 0
        %1067 = vmatprep.subr.bf16.mxu0 0
        %1068 = vmatpush1.bf16.xpose.msra.mxu0 0
        %1069 = vmatprep.subr.bf16.mxu0 0
        %1070 = vmatpush1.bf16.xpose.msra.mxu0 0
        %1071 = vmatprep.mubr.bf16.mxu0 0
        %1072 = vmatmul.mubr.bf16.gmra.mrb[0].mxu0 %v1034
        %v1073 = vpop.f32.mrb[0].mxu0
        %v1074 = vadd.f32 0.0, %v1073
        %v1075 = vpop.f32.mrb[0].mxu0
        %v1076 = vpop.f32.mrb[0].mxu0
        %v1077 = vpop.f32.mrb[0].mxu0
        %1078 = vdwg.mxu0
        %v1079 = vsel %vm804, %v1074, -inf
        %1080 = vmax.xlane.f32.xlu0 %v1079
        %v1081 = vpop.xlane.xlu0 %1080
        %v1082 = vsub.f32 %v1074, %v1081
        %v1083 = vmul.f32 %v1082, 1.442695
        %v1084 = vpow.pop %v1083
        %v1085 = vsel %vm804, %v1084, 0.0
        %1086 = vadd.xlane.f32.xlu0 %v1085
        %v1087 = vpop.xlane.xlu0 %1086
        %v1088 = vrcp.pop %v1087
        %v1089 = vmul.f32 %v1084, %v1088
        %v1090 = vpack.c.bf16 %v1089, %v1089
        %1091 = vrot.lane.b32.xlu0 %v800, 112
        %v1092 = vpop.permute.xlu0 %1091
        %v1094 = vsel %vm804, %v1090, 0
        %v1097 = vsel %vm866, %v1092, 0
        %1099 = vmatprep.subr.bf16.mxu0 0
        %1100 = vmatpush1.bf16.msra.mxu0 %v1097
        %1101 = vmatprep.subr.bf16.mxu0 0
        %1102 = vmatpush1.bf16.msra.mxu0 0
        %1103 = vmatprep.subr.bf16.mxu0 0
        %1104 = vmatpush1.bf16.msra.mxu0 0
        %1105 = vmatprep.subr.bf16.mxu0 0
        %1106 = vmatpush1.bf16.msra.mxu0 0
        %1107 = vmatprep.subr.bf16.mxu0 0
        %1108 = vmatpush1.bf16.msra.mxu0 0
        %1109 = vmatprep.subr.bf16.mxu0 0
        %1110 = vmatpush1.bf16.msra.mxu0 0
        %1111 = vmatprep.subr.bf16.mxu0 0
        %1112 = vmatpush1.bf16.msra.mxu0 0
        %1113 = vmatprep.subr.bf16.mxu0 0
        %1114 = vmatpush1.bf16.msra.mxu0 0
        %1115 = vmatprep.subr.bf16.mxu0 0
        %1116 = vmatpush1.bf16.msra.mxu0 0
        %1117 = vmatprep.subr.bf16.mxu0 0
        %1118 = vmatpush1.bf16.msra.mxu0 0
        %1119 = vmatprep.subr.bf16.mxu0 0
        %1120 = vmatpush1.bf16.msra.mxu0 0
        %1121 = vmatprep.subr.bf16.mxu0 0
        %1122 = vmatpush1.bf16.msra.mxu0 0
        %1123 = vmatprep.subr.bf16.mxu0 0
        %1124 = vmatpush1.bf16.msra.mxu0 0
        %1125 = vmatprep.subr.bf16.mxu0 0
        %1126 = vmatpush1.bf16.msra.mxu0 0
        %1127 = vmatprep.subr.bf16.mxu0 0
        %1128 = vmatpush1.bf16.msra.mxu0 0
        %1129 = vmatprep.subr.bf16.mxu0 0
        %1130 = vmatpush1.bf16.msra.mxu0 0
        %1131 = vmatprep.mubr.bf16.mxu0 0
        %1132 = vmatmul.mubr.bf16.gmra.mrb[0].mxu0 %v1094
        %v1133 = vpop.f32.mrb[0].mxu0
        %v1134 = vadd.f32 0.0, %v1133
        %v1135 = vpop.f32.mrb[0].mxu0
        %v1136 = vpop.f32.mrb[0].mxu0
        %v1137 = vpop.f32.mrb[0].mxu0
        %1138 = vdwg.mxu0
        %1140 = vrot.lane.b32.xlu0 %v1134, 16
        %v1141 = vpop.permute.xlu0 %1140
        %vm1143 = vcmask 195712
        %1144 = vst.msk [vmem:[#allocation2] sm:$0xff] %vm1143, %v1141
        %1145 = vrot.lane.b32.xlu0 %v798, 104
        %v1146 = vpop.permute.xlu0 %1145
        %1147 = vrot.lane.b32.xlu0 %v799, 72
        %v1148 = vpop.permute.xlu0 %1147
        %v1150 = vsel %vm804, %v1146, 0
        %v1153 = vsel %vm804, %v1148, 0
        %1155 = vmatprep.subr.bf16.mxu0 0
        %1156 = vmatpush1.bf16.xpose.msra.mxu0 %v1153
        %1157 = vmatprep.subr.bf16.mxu0 0
        %1158 = vmatpush1.bf16.xpose.msra.mxu0 0
        %1159 = vmatprep.subr.bf16.mxu0 0
        %1160 = vmatpush1.bf16.xpose.msra.mxu0 0
        %1161 = vmatprep.subr.bf16.mxu0 0
        %1162 = vmatpush1.bf16.xpose.msra.mxu0 0
        %1163 = vmatprep.subr.bf16.mxu0 0
        %1164 = vmatpush1.bf16.xpose.msra.mxu0 0
        %1165 = vmatprep.subr.bf16.mxu0 0
        %1166 = vmatpush1.bf16.xpose.msra.mxu0 0
        %1167 = vmatprep.subr.bf16.mxu0 0
        %1168 = vmatpush1.bf16.xpose.msra.mxu0 0
        %1169 = vmatprep.subr.bf16.mxu0 0
        %1170 = vmatpush1.bf16.xpose.msra.mxu0 0
        %1171 = vmatprep.subr.bf16.mxu0 0
        %1172 = vmatpush1.bf16.xpose.msra.mxu0 0
        %1173 = vmatprep.subr.bf16.mxu0 0
        %1174 = vmatpush1.bf16.xpose.msra.mxu0 0
        %1175 = vmatprep.subr.bf16.mxu0 0
        %1176 = vmatpush1.bf16.xpose.msra.mxu0 0
        %1177 = vmatprep.subr.bf16.mxu0 0
        %1178 = vmatpush1.bf16.xpose.msra.mxu0 0
        %1179 = vmatprep.subr.bf16.mxu0 0
        %1180 = vmatpush1.bf16.xpose.msra.mxu0 0
        %1181 = vmatprep.subr.bf16.mxu0 0
        %1182 = vmatpush1.bf16.xpose.msra.mxu0 0
        %1183 = vmatprep.subr.bf16.mxu0 0
        %1184 = vmatpush1.bf16.xpose.msra.mxu0 0
        %1185 = vmatprep.subr.bf16.mxu0 0
        %1186 = vmatpush1.bf16.xpose.msra.mxu0 0
        %1187 = vmatprep.mubr.bf16.mxu0 0
        %1188 = vmatmul.mubr.bf16.gmra.mrb[0].mxu0 %v1150
        %v1189 = vpop.f32.mrb[0].mxu0
        %v1190 = vadd.f32 0.0, %v1189
        %v1191 = vpop.f32.mrb[0].mxu0
        %v1192 = vpop.f32.mrb[0].mxu0
        %v1193 = vpop.f32.mrb[0].mxu0
        %1194 = vdwg.mxu0
        %v1195 = vsel %vm804, %v1190, -inf
        %1196 = vmax.xlane.f32.xlu0 %v1195
        %v1197 = vpop.xlane.xlu0 %1196
        %v1198 = vsub.f32 %v1190, %v1197
        %v1199 = vmul.f32 %v1198, 1.442695
        %v1200 = vpow.pop %v1199
        %v1201 = vsel %vm804, %v1200, 0.0
        %1202 = vadd.xlane.f32.xlu0 %v1201
        %v1203 = vpop.xlane.xlu0 %1202
        %v1204 = vrcp.pop %v1203
        %v1205 = vmul.f32 %v1200, %v1204
        %v1206 = vpack.c.bf16 %v1205, %v1205
        %1207 = vrot.lane.b32.xlu0 %v800, 104
        %v1208 = vpop.permute.xlu0 %1207
        %v1210 = vsel %vm804, %v1206, 0
        %v1213 = vsel %vm866, %v1208, 0
        %1215 = vmatprep.subr.bf16.mxu0 0
        %1216 = vmatpush1.bf16.msra.mxu0 %v1213
        %1217 = vmatprep.subr.bf16.mxu0 0
        %1218 = vmatpush1.bf16.msra.mxu0 0
        %1219 = vmatprep.subr.bf16.mxu0 0
        %1220 = vmatpush1.bf16.msra.mxu0 0
        %1221 = vmatprep.subr.bf16.mxu0 0
        %1222 = vmatpush1.bf16.msra.mxu0 0
        %1223 = vmatprep.subr.bf16.mxu0 0
        %1224 = vmatpush1.bf16.msra.mxu0 0
        %1225 = vmatprep.subr.bf16.mxu0 0
        %1226 = vmatpush1.bf16.msra.mxu0 0
        %1227 = vmatprep.subr.bf16.mxu0 0
        %1228 = vmatpush1.bf16.msra.mxu0 0
        %1229 = vmatprep.subr.bf16.mxu0 0
        %1230 = vmatpush1.bf16.msra.mxu0 0
        %1231 = vmatprep.subr.bf16.mxu0 0
        %1232 = vmatpush1.bf16.msra.mxu0 0
        %1233 = vmatprep.subr.bf16.mxu0 0
        %1234 = vmatpush1.bf16.msra.mxu0 0
        %1235 = vmatprep.subr.bf16.mxu0 0
        %1236 = vmatpush1.bf16.msra.mxu0 0
        %1237 = vmatprep.subr.bf16.mxu0 0
        %1238 = vmatpush1.bf16.msra.mxu0 0
        %1239 = vmatprep.subr.bf16.mxu0 0
        %1240 = vmatpush1.bf16.msra.mxu0 0
        %1241 = vmatprep.subr.bf16.mxu0 0
        %1242 = vmatpush1.bf16.msra.mxu0 0
        %1243 = vmatprep.subr.bf16.mxu0 0
        %1244 = vmatpush1.bf16.msra.mxu0 0
        %1245 = vmatprep.subr.bf16.mxu0 0
        %1246 = vmatpush1.bf16.msra.mxu0 0
        %1247 = vmatprep.mubr.bf16.mxu0 0
        %1248 = vmatmul.mubr.bf16.gmra.mrb[0].mxu0 %v1210
        %v1249 = vpop.f32.mrb[0].mxu0
        %v1250 = vadd.f32 0.0, %v1249
        %v1251 = vpop.f32.mrb[0].mxu0
        %v1252 = vpop.f32.mrb[0].mxu0
        %v1253 = vpop.f32.mrb[0].mxu0
        %1254 = vdwg.mxu0
        %1256 = vrot.lane.b32.xlu0 %v1250, 24
        %v1257 = vpop.permute.xlu0 %1256
        %vm1259 = vcmask 261312
        %1260 = vst.msk [vmem:[#allocation2] sm:$0xff] %vm1259, %v1257
        %v1261 = vld [vmem:[#allocation2] sm:$0xff]
        %v1262 = vpack.c.bf16 %v1261, %v1261
        %v1263 = vld [vmem:[#allocation11] sm:$0xf]
        %v1264 = vld [vmem:[#allocation11 + $0x4] sm:$0xf]
        %v1265 = vld [vmem:[#allocation11 + $0x8] sm:$0xf]
        %v1266 = vld [vmem:[#allocation11 + $0xc] sm:$0xf]
        %v1268 = vlaneseq
        %v1269 = vshrl.u32 %v1268, 7
        %v1270 = vsub.s32 0, %v1269
        %v1271 = vrot.slane %v593, %v1270
        %v1277 = vunpack.c.l.b16 %v1263
        %v1278 = vunpack.c.l.b16 %v1264
        %v1279 = vunpack.c.l.b16 %v1265
        %v1280 = vunpack.c.l.b16 %v1266
        %v1281 = vpack.c.b16 %v1278, %v1277
        %v1282 = vpack.c.b16 %v1280, %v1279
        %v1286 = vsel %vm693, %v1262, 0
        %1288 = vmatprep.subr.bf16.mxu0 0
        %1289 = vmatpush1.bf16.msra.mxu0 %v1281
        %1290 = vmatprep.subr.bf16.mxu0 0
        %1291 = vmatpush1.bf16.msra.mxu0 %v1282
        %1292 = vmatprep.subr.bf16.mxu0 0
        %1293 = vmatpush1.bf16.msra.mxu0 0
        %1294 = vmatprep.subr.bf16.mxu0 0
        %1295 = vmatpush1.bf16.msra.mxu0 0
        %1296 = vmatprep.subr.bf16.mxu0 0
        %1297 = vmatpush1.bf16.msra.mxu0 0
        %1298 = vmatprep.subr.bf16.mxu0 0
        %1299 = vmatpush1.bf16.msra.mxu0 0
        %1300 = vmatprep.subr.bf16.mxu0 0
        %1301 = vmatpush1.bf16.msra.mxu0 0
        %1302 = vmatprep.subr.bf16.mxu0 0
        %1303 = vmatpush1.bf16.msra.mxu0 0
        %1304 = vmatprep.subr.bf16.mxu0 0
        %1305 = vmatpush1.bf16.msra.mxu0 0
        %1306 = vmatprep.subr.bf16.mxu0 0
        %1307 = vmatpush1.bf16.msra.mxu0 0
        %1308 = vmatprep.subr.bf16.mxu0 0
        %1309 = vmatpush1.bf16.msra.mxu0 0
        %1310 = vmatprep.subr.bf16.mxu0 0
        %1311 = vmatpush1.bf16.msra.mxu0 0
        %1312 = vmatprep.subr.bf16.mxu0 0
        %1313 = vmatpush1.bf16.msra.mxu0 0
        %1314 = vmatprep.subr.bf16.mxu0 0
        %1315 = vmatpush1.bf16.msra.mxu0 0
        %1316 = vmatprep.subr.bf16.mxu0 0
        %1317 = vmatpush1.bf16.msra.mxu0 0
        %1318 = vmatprep.subr.bf16.mxu0 0
        %1319 = vmatpush1.bf16.msra.mxu0 0
        %1320 = vmatprep.mubr.bf16.mxu0 0
        %1321 = vmatmul.mubr.bf16.gmra.mrb[0].mxu0 %v1286
        %v1322 = vpop.f32.mrb[0].mxu0
        %v1323 = vadd.f32 %v1271, %v1322
        %v1324 = vpop.f32.mrb[0].mxu0
        %v1325 = vpop.f32.mrb[0].mxu0
        %v1326 = vpop.f32.mrb[0].mxu0
        %1327 = vdwg.mxu0
        %v1328 = vadd.f32 %v592, %v1323
        %v1329 = vsel %vm693, %v1328, 0.0
        %1330 = vadd.xlane.f32.xlu0 %v1329
        %v1331 = vpop.xlane.xlu0 %1330
        %v1332 = vrcp.pop 32.0
        %v1333 = vmul.f32 %v1331, %v1332
        %v1334 = vsub.f32 %v1328, %v1333
        %v1335 = vmul.f32 %v1334, %v1334
        %v1336 = vsel %vm693, %v1335, 0.0
        %1337 = vadd.xlane.f32.xlu0 %v1336
        %v1338 = vpop.xlane.xlu0 %1337
        %v1339 = vmul.f32 %v1338, %v1332
        %v1340 = vadd.f32 %v1339, 1e-05
        %v1341 = vrsqrt.pop %v1340
        %v1342 = vmul.f32 %v1334, %v1341
        %v1344 = vlaneseq
        %v1345 = vshrl.u32 %v1344, 7
        %v1346 = vsub.s32 0, %v1345
        %v1347 = vrot.slane %v594, %v1346
        %v1349 = vmul.f32 %v1342, %v1347
        %v1351 = vlaneseq
        %v1352 = vshrl.u32 %v1351, 7
        %v1353 = vsub.s32 0, %v1352
        %v1354 = vrot.slane %v595, %v1353
        %v1356 = vadd.f32 %v1349, %v1354
        %v1357 = vpack.c.bf16 %v1356, %v1356
        %v1358 = vld [vmem:[%s8] sm:$0xf]
        %v1359 = vld [vmem:[%s8 + $0x4] sm:$0xf]
        %v1360 = vld [vmem:[%s8 + $0x8] sm:$0xf]
        %v1361 = vld [vmem:[%s8 + $0xc] sm:$0xf]
        %v1363 = vlaneseq
        %v1364 = vshrl.u32 %v1363, 7
        %v1365 = vsub.s32 0, %v1364
        %v1366 = vrot.slane %v596, %v1365
        %v1372 = vunpack.c.l.b16 %v1358
        %v1373 = vunpack.c.l.b16 %v1359
        %v1374 = vunpack.c.l.b16 %v1360
        %v1375 = vunpack.c.l.b16 %v1361
        %v1376 = vpack.c.b16 %v1373, %v1372
        %v1377 = vpack.c.b16 %v1375, %v1374
        %v1381 = vsel %vm693, %v1357, 0
        %1383 = vmatprep.subr.bf16.mxu0 0
        %1384 = vmatpush1.bf16.msra.mxu0 %v1376
        %1385 = vmatprep.subr.bf16.mxu0 0
        %1386 = vmatpush1.bf16.msra.mxu0 %v1377
        %1387 = vmatprep.subr.bf16.mxu0 0
        %1388 = vmatpush1.bf16.msra.mxu0 0
        %1389 = vmatprep.subr.bf16.mxu0 0
        %1390 = vmatpush1.bf16.msra.mxu0 0
        %1391 = vmatprep.subr.bf16.mxu0 0
        %1392 = vmatpush1.bf16.msra.mxu0 0
        %1393 = vmatprep.subr.bf16.mxu0 0
        %1394 = vmatpush1.bf16.msra.mxu0 0
        %1395 = vmatprep.subr.bf16.mxu0 0
        %1396 = vmatpush1.bf16.msra.mxu0 0
        %1397 = vmatprep.subr.bf16.mxu0 0
        %1398 = vmatpush1.bf16.msra.mxu0 0
        %1399 = vmatprep.subr.bf16.mxu0 0
        %1400 = vmatpush1.bf16.msra.mxu0 0
        %1401 = vmatprep.subr.bf16.mxu0 0
        %1402 = vmatpush1.bf16.msra.mxu0 0
        %1403 = vmatprep.subr.bf16.mxu0 0
        %1404 = vmatpush1.bf16.msra.mxu0 0
        %1405 = vmatprep.subr.bf16.mxu0 0
        %1406 = vmatpush1.bf16.msra.mxu0 0
        %1407 = vmatprep.subr.bf16.mxu0 0
        %1408 = vmatpush1.bf16.msra.mxu0 0
        %1409 = vmatprep.subr.bf16.mxu0 0
        %1410 = vmatpush1.bf16.msra.mxu0 0
        %1411 = vmatprep.subr.bf16.mxu0 0
        %1412 = vmatpush1.bf16.msra.mxu0 0
        %1413 = vmatprep.subr.bf16.mxu0 0
        %1414 = vmatpush1.bf16.msra.mxu0 0
        %1415 = vmatprep.mubr.bf16.mxu0 0
        %1416 = vmatmul.mubr.bf16.gmra.mrb[0].mxu0 %v1381
        %v1417 = vpop.f32.mrb[0].mxu0
        %v1418 = vadd.f32 %v1366, %v1417
        %v1419 = vpop.f32.mrb[0].mxu0
        %v1420 = vpop.f32.mrb[0].mxu0
        %v1421 = vpop.f32.mrb[0].mxu0
        %1422 = vdwg.mxu0
        %v1423 = vmul.f32 %v1418, 0.5
        %v1424 = vmul.f32 %v1418, 0.70710677
        %v1425 = verf.f32.pop %v1424
        %v1426 = vadd.f32 %v1425, 1.0
        %v1427 = vmul.f32 %v1423, %v1426
        %v1428 = vpack.c.bf16 %v1427, %v1427
        %v1429 = vld [vmem:[%s10] sm:$0xf]
        %v1430 = vld [vmem:[%s10 + $0x4] sm:$0xf]
        %v1431 = vld [vmem:[%s10 + $0x8] sm:$0xf]
        %v1432 = vld [vmem:[%s10 + $0xc] sm:$0xf]
        %v1434 = vlaneseq
        %v1435 = vshrl.u32 %v1434, 7
        %v1436 = vsub.s32 0, %v1435
        %v1437 = vrot.slane %v597, %v1436
        %v1443 = vunpack.c.l.b16 %v1429
        %v1444 = vunpack.c.l.b16 %v1430
        %v1445 = vunpack.c.l.b16 %v1431
        %v1446 = vunpack.c.l.b16 %v1432
        %v1447 = vpack.c.b16 %v1444, %v1443
        %v1448 = vpack.c.b16 %v1446, %v1445
        %v1452 = vsel %vm693, %v1428, 0
        %1454 = vmatprep.subr.bf16.mxu0 0
        %1455 = vmatpush1.bf16.msra.mxu0 %v1447
        %1456 = vmatprep.subr.bf16.mxu0 0
        %1457 = vmatpush1.bf16.msra.mxu0 %v1448
        %1458 = vmatprep.subr.bf16.mxu0 0
        %1459 = vmatpush1.bf16.msra.mxu0 0
        %1460 = vmatprep.subr.bf16.mxu0 0
        %1461 = vmatpush1.bf16.msra.mxu0 0
        %1462 = vmatprep.subr.bf16.mxu0 0
        %1463 = vmatpush1.bf16.msra.mxu0 0
        %1464 = vmatprep.subr.bf16.mxu0 0
        %1465 = vmatpush1.bf16.msra.mxu0 0
        %1466 = vmatprep.subr.bf16.mxu0 0
        %1467 = vmatpush1.bf16.msra.mxu0 0
        %1468 = vmatprep.subr.bf16.mxu0 0
        %1469 = vmatpush1.bf16.msra.mxu0 0
        %1470 = vmatprep.subr.bf16.mxu0 0
        %1471 = vmatpush1.bf16.msra.mxu0 0
        %1472 = vmatprep.subr.bf16.mxu0 0
        %1473 = vmatpush1.bf16.msra.mxu0 0
        %1474 = vmatprep.subr.bf16.mxu0 0
        %1475 = vmatpush1.bf16.msra.mxu0 0
        %1476 = vmatprep.subr.bf16.mxu0 0
        %1477 = vmatpush1.bf16.msra.mxu0 0
        %1478 = vmatprep.subr.bf16.mxu0 0
        %1479 = vmatpush1.bf16.msra.mxu0 0
        %1480 = vmatprep.subr.bf16.mxu0 0
        %1481 = vmatpush1.bf16.msra.mxu0 0
        %1482 = vmatprep.subr.bf16.mxu0 0
        %1483 = vmatpush1.bf16.msra.mxu0 0
        %1484 = vmatprep.subr.bf16.mxu0 0
        %1485 = vmatpush1.bf16.msra.mxu0 0
        %1486 = vmatprep.mubr.bf16.mxu0 0
        %1487 = vmatmul.mubr.bf16.gmra.mrb[0].mxu0 %v1452
        %v1488 = vpop.f32.mrb[0].mxu0
        %v1489 = vadd.f32 %v1437, %v1488
        %v1490 = vpop.f32.mrb[0].mxu0
        %v1491 = vpop.f32.mrb[0].mxu0
        %v1492 = vpop.f32.mrb[0].mxu0
        %1493 = vdwg.mxu0
        %v1494 = vadd.f32 %v1489, %v1356
        %v1495 = vsel %vm693, %v1494, 0.0
        %1496 = vadd.xlane.f32.xlu0 %v1495
        %v1497 = vpop.xlane.xlu0 %1496
        %v1498 = vmul.f32 %v1497, %v1332
        %v1499 = vsub.f32 %v1494, %v1498
        %v1500 = vmul.f32 %v1499, %v1499
        %v1501 = vsel %vm693, %v1500, 0.0
        %1502 = vadd.xlane.f32.xlu0 %v1501
        %v1503 = vpop.xlane.xlu0 %1502
        %v1504 = vmul.f32 %v1503, %v1332
        %v1505 = vadd.f32 %v1504, 1e-05
        %v1506 = vrsqrt.pop %v1505
        %v1507 = vmul.f32 %v1499, %v1506
        %v1509 = vlaneseq
        %v1510 = vshrl.u32 %v1509, 7
        %v1511 = vsub.s32 0, %v1510
        %v1512 = vrot.slane %v598, %v1511
        %v1514 = vmul.f32 %v1507, %v1512
        %v1516 = vlaneseq
        %v1517 = vshrl.u32 %v1516, 7
        %v1518 = vsub.s32 0, %v1517
        %v1519 = vrot.slane %v599, %v1518
        %v1521 = vadd.f32 %v1514, %v1519
        %1522 = vst.msk [vmem:[%s590] sm:$0xff] %vm693, %v1521
        %s1523 = sand.u32 %s348, 1
        %s1524 = scalar_lea.sflag [#allocation5], %s1523
        %s1525 = sand.u32 %s348, 1
        %s1526 = smul.addr %s1525, 8
        %s1527 = scalar_lea.vmem [#allocation15], %s1526
        // Predicated region
        $region105: #{tpu_custom_call.1} parent=75 // pred_check
          %p1528 = pneg %p358
        $region106: #{tpu_custom_call.1} parent=75 // pred_check_branch
          %1530 = sbr.rel (%p1528) target = $region108
        $region107: #{tpu_custom_call.1} parent=75 // pred_region
          %s1532 = ssub.s32 128, 128
          %1533 = vsyncadd %s1524, %s1532
          %s1534 = smul.addr %s36, 128
          %s1535 = scalar_lea.hbm %s14, %s1534
          %s1537 = sshll.u32 %s1527, 4
          %s1538 = int_to_ptr.vmem [resolvable:$true] %s1537
          %1540 = dma.vmem_to_hbm [thread:$0]  %s1538, 128, %s1535, %s1524
        $region108: #{tpu_custom_call.1} parent=75 // pred_fallthru
          _
      $region76: #{tpu_custom_call.1} parent=5 // pred_fallthru
        _
      %p1541 = scmp.le.s32.totalorder 2, %s31
      // Predicated region
      $region109: #{tpu_custom_call.1} parent=5 // pred_check
        %p1542 = pneg %p1541
      $region110: #{tpu_custom_call.1} parent=5 // pred_check_branch
        %1544 = sbr.rel (%p1542) target = $region112
      $region111: #{tpu_custom_call.1} parent=5 // pred_region
        %s1545 = ssub.s32 %s31, 2
        // Predicated region
        $region113: #{tpu_custom_call.1} parent=111 // pred_check
          %p1546 = pneg %p364
        $region114: #{tpu_custom_call.1} parent=111 // pred_check_branch
          %1548 = sbr.rel (%p1546) target = $region116
        $region115: #{tpu_custom_call.1} parent=111 // pred_region
          %s1549 = sand.u32 %s349, 1
          %s1550 = scalar_lea.sflag [#allocation5], %s1549
          %s1551 = sand.u32 %s349, 1
          %s1552 = smul.addr %s1551, 8
          %s1553 = scalar_lea.vmem [#allocation15], %s1552
          %1554 = dma.done %s1550, 128
        $region116: #{tpu_custom_call.1} parent=111 // pred_fallthru
          _
      $region112: #{tpu_custom_call.1} parent=5 // pred_fallthru
        _
    $region6: #{tpu_custom_call.1} parent=1 // loop_footer
      %s35 = sadd.s32 1, %s31
    $region7: #{tpu_custom_call.1} parent=1 // loop_footer_branch
      %30 = sbr.rel target = $region3
    $region8: #{tpu_custom_call.1} parent=1 // loop_exit
      _
    %1555 = vsyncpa [#allocation4], 1
    %s1556 = scalar_lea.sflag [#allocation4], 1
    %1557 = vsyncpa %s1556, 1
    %1558 = vsyncpa [#allocation7], 1
    %s1559 = scalar_lea.sflag [#allocation7], 1
    %1560 = vsyncpa %s1559, 1
    %1561 = vsyncpa [#allocation10], 1
    %1562 = vsyncpa [#allocation13], 1
    %1563 = vsyncpa [#allocation5], 1
    %s1564 = scalar_lea.sflag [#allocation5], 1
    %1565 = vsyncpa %s1564, 1

</llo_original>
